<compile_context>
chip_gen: v5e
topology: v5e:2x2
jax: 0.10.0
libtpu: 0.0.40
codegen_flags: <defaults>
</compile_context>

<pallas_src>
import functools

import jax
import jax.numpy as jnp
from jax.experimental import pallas as pl
from jax.experimental.pallas import tpu as pltpu

HIDDEN = 256


def mlp1_kernel(x_ref,
                w1_ref, b1_ref,
                w2_ref, b2_ref,
                w3_ref, b3_ref,
                w4_ref, b4_ref,
                w5_ref, b5_ref,
                o_ref):
    # ---- Layer 1: in_features == 1, rank-1 update -> VPU broadcast, no MXU pass. ----
    x = x_ref[...]                                        # (tm, 1) f32
    h = x * w1_ref[...] + b1_ref[...]                     # (tm,1)*(1,256)+(1,256) -> (tm,256)
    h = jnp.maximum(h, 0.0)

    # ---- Layers 2-4: 256x256 matmuls on the MXU, bf16 operands, f32 accumulation. ----
    for w_ref, b_ref in ((w2_ref, b2_ref), (w3_ref, b3_ref), (w4_ref, b4_ref)):
        h = jnp.dot(h.astype(jnp.bfloat16), w_ref[...],
                    preferred_element_type=jnp.float32) + b_ref[...]
        h = jnp.maximum(h, 0.0)

    # ---- Layer 5: out_features == 1 -> VPU multiply + XLU reduce, no MXU pass. ----
    out = jnp.sum(h * w5_ref[...], axis=-1, keepdims=True) + b5_ref[0, 0]
    o_ref[...] = out.astype(o_ref.dtype)


def _const_spec(shape):
    # Grid-invariant parameter block: constant index_map => fetched once, reused every step.
    return pl.BlockSpec(shape, lambda i: (0, 0))


@functools.partial(jax.jit, static_argnames=("tm",))
def mlp1_forward(x, params, *, tm=512):
    """x: (N, 1) float32. params: dict of f32 weights/biases (torch-Linear-like init).

    Returns (N, 1) float32. tm should be a multiple of 256 (v6e/v7x MXU tile) and 128 (v5e);
    keep N // tm >= 2 so the 'parallel' grid axis can shard across v7x's two TensorCores.
    """
    N, _ = x.shape
    # TODO(synk): ragged batches (N % tm != 0) would need a pl.cdiv grid + masked tail.
    assert N % tm == 0, "batch must be a multiple of the tile size tm"

    # Present parameters in kernel-friendly layouts / dtypes.
    w1 = params["w1"].reshape(1, HIDDEN).astype(jnp.float32)      # VPU broadcast row
    b1 = params["b1"].reshape(1, HIDDEN).astype(jnp.float32)
    w2 = params["w2"].astype(jnp.bfloat16)                        # MXU operands in bf16
    b2 = params["b2"].astype(jnp.float32)
    w3 = params["w3"].astype(jnp.bfloat16)
    b3 = params["b3"].astype(jnp.float32)
    w4 = params["w4"].astype(jnp.bfloat16)
    b4 = params["b4"].astype(jnp.float32)
    w5 = params["w5"].reshape(1, HIDDEN).astype(jnp.float32)      # VPU reduce row
    b5 = params["b5"].reshape(1, 1).astype(jnp.float32)           # scalar, lives in SMEM

    in_specs = [
        pl.BlockSpec((tm, 1), lambda i: (i, 0)),                  # x tile over batch
        _const_spec((1, HIDDEN)), _const_spec((1, HIDDEN)),       # w1 row, b1
        _const_spec((HIDDEN, HIDDEN)), _const_spec((1, HIDDEN)),  # w2, b2
        _const_spec((HIDDEN, HIDDEN)), _const_spec((1, HIDDEN)),  # w3, b3
        _const_spec((HIDDEN, HIDDEN)), _const_spec((1, HIDDEN)),  # w4, b4
        _const_spec((1, HIDDEN)),                                 # w5 row
        pl.BlockSpec(memory_space=pltpu.MemorySpace.SMEM),        # b5 scalar in SMEM
    ]

    # TODO(synk): if profiling shows exposed masked stores for the (tm,1) I/O tiles at small
    # N, reshape x/out to a lane-dense (N//128, 128) layout at the wrapper; compute-bound at
    # large N so not done here.
    return pl.pallas_call(
        mlp1_kernel,
        out_shape=jax.ShapeDtypeStruct((N, 1), x.dtype),
        grid_spec=pltpu.PrefetchScalarGridSpec(
            num_scalar_prefetch=0,
            grid=(N // tm,),
            in_specs=in_specs,
            out_specs=pl.BlockSpec((tm, 1), lambda i: (i, 0)),
        ),
        compiler_params=pltpu.CompilerParams(
            dimension_semantics=("parallel",),
        ),
    )(x, w1, b1, w2, b2, w3, b3, w4, b4, w5, b5)


def init_params(key):
    """Deterministic init mimicking torch.nn.Linear: U(-1/sqrt(fan_in), 1/sqrt(fan_in)).
    Weights stored as (in_features, out_features); biases as (1, out_features)."""
    dims = [(1, HIDDEN), (HIDDEN, HIDDEN), (HIDDEN, HIDDEN), (HIDDEN, HIDDEN), (HIDDEN, 1)]
    params = {}
    for idx, (fan_in, fan_out) in enumerate(dims, start=1):
        key, kw, kb = jax.random.split(key, 3)
        bound = 1.0 / jnp.sqrt(jnp.float32(fan_in))
        params[f"w{idx}"] = jax.random.uniform(
            kw, (fan_in, fan_out), jnp.float32, minval=-bound, maxval=bound)
        params[f"b{idx}"] = jax.random.uniform(
            kb, (1, fan_out), jnp.float32, minval=-bound, maxval=bound)
    return params


def reference_forward_matched(x, params):
    """Reference that mirrors the kernel's math exactly (bf16 matmul operands, f32 accum)."""
    h = jnp.maximum(x * params["w1"].reshape(1, HIDDEN) + params["b1"], 0.0)
    for layer in (2, 3, 4):
        w = params[f"w{layer}"].astype(jnp.bfloat16)
        h = jnp.dot(h.astype(jnp.bfloat16), w,
                    preferred_element_type=jnp.float32) + params[f"b{layer}"]
        h = jnp.maximum(h, 0.0)
    return jnp.sum(h * params["w5"].reshape(1, HIDDEN), axis=-1, keepdims=True) \
        + params["b5"][0, 0]


def reference_forward_f32(x, params):
    """Pure f32 reference of the original module semantics."""
    h = jnp.maximum(x @ params["w1"] + params["b1"], 0.0)
    h = jnp.maximum(h @ params["w2"] + params["b2"], 0.0)
    h = jnp.maximum(h @ params["w3"] + params["b3"], 0.0)
    h = jnp.maximum(h @ params["w4"] + params["b4"], 0.0)
    return h @ params["w5"] + params["b5"]


if __name__ == "__main__":
    key = jax.random.PRNGKey(0)
    key, kx = jax.random.split(key)

    N, TM = 512, 256                            # small batch; 2 parallel grid steps
    x = jax.random.normal(kx, (N, 1), jnp.float32)
    params = init_params(key)

    out = jax.block_until_ready(mlp1_forward(x, params, tm=TM))
    assert out.shape == (N, 1)

    # Exact-math reference (same bf16 quantization) -> tight tolerance.
    ref_matched = reference_forward_matched(x, params)
    assert jnp.allclose(out, ref_matched, atol=1e-3, rtol=1e-3), "mismatch vs matched ref"

    # Original f32 module semantics -> loose tolerance (bf16 matmul operands).
    ref_f32 = reference_forward_f32(x, params)
    assert jnp.allclose(out, ref_f32, atol=5e-2, rtol=5e-2), "mismatch vs f32 reference"

    print("KERNEL_OK")
</pallas_src>

<mosaic_0001>
module attributes {stable_mosaic.version = 11 : i64} {
  func.func @mlp1_kernel(%arg0: i32, %arg1: memref<256x1xf32, #tpu.memory_space<vmem>>, %arg2: memref<1x256xf32, #tpu.memory_space<vmem>>, %arg3: memref<1x256xf32, #tpu.memory_space<vmem>>, %arg4: memref<256x256xbf16, #tpu.memory_space<vmem>>, %arg5: memref<1x256xf32, #tpu.memory_space<vmem>>, %arg6: memref<256x256xbf16, #tpu.memory_space<vmem>>, %arg7: memref<1x256xf32, #tpu.memory_space<vmem>>, %arg8: memref<256x256xbf16, #tpu.memory_space<vmem>>, %arg9: memref<1x256xf32, #tpu.memory_space<vmem>>, %arg10: memref<1x256xf32, #tpu.memory_space<vmem>>, %arg11: memref<1x1xf32, #tpu.memory_space<smem>>, %arg12: memref<256x1xf32, #tpu.memory_space<vmem>>) attributes {dimension_semantics = [#tpu.dimension_semantics<parallel>], iteration_bounds = array<i64: 2>, scalar_prefetch = 0 : i64, scratch_operands = 0 : i64, tpu.core_type = #tpu.core_type<tc>, window_params = [{transform_indices = @transform_0, window_bounds = array<i64: 256, 1>}, {pipeline_mode = #tpu.pipeline_mode<synchronous>, transform_indices = @transform_1, window_bounds = array<i64: 1, 256>}, {pipeline_mode = #tpu.pipeline_mode<synchronous>, transform_indices = @transform_2, window_bounds = array<i64: 1, 256>}, {pipeline_mode = #tpu.pipeline_mode<synchronous>, transform_indices = @transform_3, window_bounds = array<i64: 256, 256>}, {pipeline_mode = #tpu.pipeline_mode<synchronous>, transform_indices = @transform_4, window_bounds = array<i64: 1, 256>}, {pipeline_mode = #tpu.pipeline_mode<synchronous>, transform_indices = @transform_5, window_bounds = array<i64: 256, 256>}, {pipeline_mode = #tpu.pipeline_mode<synchronous>, transform_indices = @transform_6, window_bounds = array<i64: 1, 256>}, {pipeline_mode = #tpu.pipeline_mode<synchronous>, transform_indices = @transform_7, window_bounds = array<i64: 256, 256>}, {pipeline_mode = #tpu.pipeline_mode<synchronous>, transform_indices = @transform_8, window_bounds = array<i64: 1, 256>}, {pipeline_mode = #tpu.pipeline_mode<synchronous>, transform_indices = @transform_9, window_bounds = array<i64: 1, 256>}, {transform_indices = @transform_10, window_bounds = array<i64: 1, 1>}, {transform_indices = @transform_11, window_bounds = array<i64: 256, 1>}]} {
    %c0 = arith.constant 0 : index
    %c0_0 = arith.constant 0 : index
    %0 = vector.load %arg1[%c0, %c0_0] : memref<256x1xf32, #tpu.memory_space<vmem>>, vector<256x1xf32>
    %c0_1 = arith.constant 0 : index
    %c0_2 = arith.constant 0 : index
    %1 = vector.load %arg2[%c0_1, %c0_2] : memref<1x256xf32, #tpu.memory_space<vmem>>, vector<1x256xf32>
    %2 = vector.broadcast %0 : vector<256x1xf32> to vector<256x256xf32>
    %3 = vector.broadcast %1 : vector<1x256xf32> to vector<256x256xf32>
    %4 = arith.mulf %2, %3 : vector<256x256xf32>
    %c0_3 = arith.constant 0 : index
    %c0_4 = arith.constant 0 : index
    %5 = vector.load %arg3[%c0_3, %c0_4] : memref<1x256xf32, #tpu.memory_space<vmem>>, vector<1x256xf32>
    %6 = vector.broadcast %5 : vector<1x256xf32> to vector<256x256xf32>
    %7 = arith.addf %4, %6 : vector<256x256xf32>
    %cst = arith.constant 0.000000e+00 : f32
    %8 = vector.broadcast %cst : f32 to vector<256x256xf32>
    %9 = arith.maximumf %7, %8 : vector<256x256xf32>
    %10 = arith.truncf %9 : vector<256x256xf32> to vector<256x256xbf16>
    %c0_5 = arith.constant 0 : index
    %c0_6 = arith.constant 0 : index
    %11 = vector.load %arg4[%c0_5, %c0_6] : memref<256x256xbf16, #tpu.memory_space<vmem>>, vector<256x256xbf16>
    %cst_7 = arith.constant dense<0.000000e+00> : vector<256x256xf32>
    %12 = tpu.matmul %10, %11, %cst_7 {dimension_numbers = #tpu.dot_dimension_numbers<[1], [0], [0], [1], [0, 0, 1, 1], [], []>} : vector<256x256xbf16>, vector<256x256xbf16>, vector<256x256xf32> -> vector<256x256xf32>
    %c0_8 = arith.constant 0 : index
    %c0_9 = arith.constant 0 : index
    %13 = vector.load %arg5[%c0_8, %c0_9] : memref<1x256xf32, #tpu.memory_space<vmem>>, vector<1x256xf32>
    %14 = vector.broadcast %13 : vector<1x256xf32> to vector<256x256xf32>
    %15 = arith.addf %12, %14 : vector<256x256xf32>
    %cst_10 = arith.constant 0.000000e+00 : f32
    %16 = vector.broadcast %cst_10 : f32 to vector<256x256xf32>
    %17 = arith.maximumf %15, %16 : vector<256x256xf32>
    %18 = arith.truncf %17 : vector<256x256xf32> to vector<256x256xbf16>
    %c0_11 = arith.constant 0 : index
    %c0_12 = arith.constant 0 : index
    %19 = vector.load %arg6[%c0_11, %c0_12] : memref<256x256xbf16, #tpu.memory_space<vmem>>, vector<256x256xbf16>
    %cst_13 = arith.constant dense<0.000000e+00> : vector<256x256xf32>
    %20 = tpu.matmul %18, %19, %cst_13 {dimension_numbers = #tpu.dot_dimension_numbers<[1], [0], [0], [1], [0, 0, 1, 1], [], []>} : vector<256x256xbf16>, vector<256x256xbf16>, vector<256x256xf32> -> vector<256x256xf32>
    %c0_14 = arith.constant 0 : index
    %c0_15 = arith.constant 0 : index
    %21 = vector.load %arg7[%c0_14, %c0_15] : memref<1x256xf32, #tpu.memory_space<vmem>>, vector<1x256xf32>
    %22 = vector.broadcast %21 : vector<1x256xf32> to vector<256x256xf32>
    %23 = arith.addf %20, %22 : vector<256x256xf32>
    %cst_16 = arith.constant 0.000000e+00 : f32
    %24 = vector.broadcast %cst_16 : f32 to vector<256x256xf32>
    %25 = arith.maximumf %23, %24 : vector<256x256xf32>
    %26 = arith.truncf %25 : vector<256x256xf32> to vector<256x256xbf16>
    %c0_17 = arith.constant 0 : index
    %c0_18 = arith.constant 0 : index
    %27 = vector.load %arg8[%c0_17, %c0_18] : memref<256x256xbf16, #tpu.memory_space<vmem>>, vector<256x256xbf16>
    %cst_19 = arith.constant dense<0.000000e+00> : vector<256x256xf32>
    %28 = tpu.matmul %26, %27, %cst_19 {dimension_numbers = #tpu.dot_dimension_numbers<[1], [0], [0], [1], [0, 0, 1, 1], [], []>} : vector<256x256xbf16>, vector<256x256xbf16>, vector<256x256xf32> -> vector<256x256xf32>
    %c0_20 = arith.constant 0 : index
    %c0_21 = arith.constant 0 : index
    %29 = vector.load %arg9[%c0_20, %c0_21] : memref<1x256xf32, #tpu.memory_space<vmem>>, vector<1x256xf32>
    %30 = vector.broadcast %29 : vector<1x256xf32> to vector<256x256xf32>
    %31 = arith.addf %28, %30 : vector<256x256xf32>
    %cst_22 = arith.constant 0.000000e+00 : f32
    %32 = vector.broadcast %cst_22 : f32 to vector<256x256xf32>
    %33 = arith.maximumf %31, %32 : vector<256x256xf32>
    %c0_23 = arith.constant 0 : index
    %c0_24 = arith.constant 0 : index
    %34 = vector.load %arg10[%c0_23, %c0_24] : memref<1x256xf32, #tpu.memory_space<vmem>>, vector<1x256xf32>
    %35 = vector.broadcast %34 : vector<1x256xf32> to vector<256x256xf32>
    %36 = arith.mulf %33, %35 : vector<256x256xf32>
    %cst_25 = arith.constant dense<0.000000e+00> : vector<256xf32>
    %37 = vector.multi_reduction <add>, %36, %cst_25 [1] : vector<256x256xf32> to vector<256xf32>
    %38 = vector.shape_cast %37 : vector<256xf32> to vector<256x1xf32>
    %c0_26 = arith.constant 0 : index
    %c0_27 = arith.constant 0 : index
    %39 = memref.load %arg11[%c0_26, %c0_27] : memref<1x1xf32, #tpu.memory_space<smem>>
    %40 = vector.broadcast %39 : f32 to vector<256x1xf32>
    %41 = arith.addf %38, %40 : vector<256x1xf32>
    %c0_28 = arith.constant 0 : index
    %c0_29 = arith.constant 0 : index
    %42 = vector.load %arg12[%c0_28, %c0_29] : memref<256x1xf32, #tpu.memory_space<vmem>>, vector<256x1xf32>
    tpu.vector_store %arg12[%c0_28, %c0_29], %41 {strides = array<i32>} : memref<256x1xf32, #tpu.memory_space<vmem>>, vector<256x1xf32>,
    return
  }
  func.func @transform_0(%arg0: i32) -> (i32, i32) {
    %c0_i32 = arith.constant 0 : i32
    %c0_i32_0 = arith.constant 0 : i32
    return %arg0, %c0_i32 : i32, i32
  }
  func.func @transform_1(%arg0: i32) -> (i32, i32) {
    %c0_i32 = arith.constant 0 : i32
    %c0_i32_0 = arith.constant 0 : i32
    %c0_i32_1 = arith.constant 0 : i32
    return %c0_i32, %c0_i32_0 : i32, i32
  }
  func.func @transform_2(%arg0: i32) -> (i32, i32) {
    %c0_i32 = arith.constant 0 : i32
    %c0_i32_0 = arith.constant 0 : i32
    %c0_i32_1 = arith.constant 0 : i32
    return %c0_i32, %c0_i32_0 : i32, i32
  }
  func.func @transform_3(%arg0: i32) -> (i32, i32) {
    %c0_i32 = arith.constant 0 : i32
    %c0_i32_0 = arith.constant 0 : i32
    %c0_i32_1 = arith.constant 0 : i32
    return %c0_i32, %c0_i32_0 : i32, i32
  }
  func.func @transform_4(%arg0: i32) -> (i32, i32) {
    %c0_i32 = arith.constant 0 : i32
    %c0_i32_0 = arith.constant 0 : i32
    %c0_i32_1 = arith.constant 0 : i32
    return %c0_i32, %c0_i32_0 : i32, i32
  }
  func.func @transform_5(%arg0: i32) -> (i32, i32) {
    %c0_i32 = arith.constant 0 : i32
    %c0_i32_0 = arith.constant 0 : i32
    %c0_i32_1 = arith.constant 0 : i32
    return %c0_i32, %c0_i32_0 : i32, i32
  }
  func.func @transform_6(%arg0: i32) -> (i32, i32) {
    %c0_i32 = arith.constant 0 : i32
    %c0_i32_0 = arith.constant 0 : i32
    %c0_i32_1 = arith.constant 0 : i32
    return %c0_i32, %c0_i32_0 : i32, i32
  }
  func.func @transform_7(%arg0: i32) -> (i32, i32) {
    %c0_i32 = arith.constant 0 : i32
    %c0_i32_0 = arith.constant 0 : i32
    %c0_i32_1 = arith.constant 0 : i32
    return %c0_i32, %c0_i32_0 : i32, i32
  }
  func.func @transform_8(%arg0: i32) -> (i32, i32) {
    %c0_i32 = arith.constant 0 : i32
    %c0_i32_0 = arith.constant 0 : i32
    %c0_i32_1 = arith.constant 0 : i32
    return %c0_i32, %c0_i32_0 : i32, i32
  }
  func.func @transform_9(%arg0: i32) -> (i32, i32) {
    %c0_i32 = arith.constant 0 : i32
    %c0_i32_0 = arith.constant 0 : i32
    %c0_i32_1 = arith.constant 0 : i32
    return %c0_i32, %c0_i32_0 : i32, i32
  }
  func.func @transform_10(%arg0: i32) -> (i32, i32) {
    %c0_i32 = arith.constant 0 : i32
    %c0_i32_0 = arith.constant 0 : i32
    %c0_i32_1 = arith.constant 0 : i32
    return %c0_i32, %c0_i32_0 : i32, i32
  }
  func.func @transform_11(%arg0: i32) -> (i32, i32) {
    %c0_i32 = arith.constant 0 : i32
    %c0_i32_0 = arith.constant 0 : i32
    return %arg0, %c0_i32 : i32, i32
  }
}

</mosaic_0001>

<llo_original>
// kernel: mlp1_forward.1
$region0: #{mlp1_forward.1}
  #allocation0 [shape = 'u32[]', space=smem, size = 0x4, offset = 0x4, fixed_abs, tag = 'smem constant byte address 0x4 - core index']
  #allocation1 [shape = 'u32[72,128]{1,0:T(1,128)}', space=vmem, size = 0x9000, scoped, tag = 'internal scratch']
  #allocation2 [shape = 'f32[1,1]{1,0:T(1,128)S(6)}', space=smem, size = 0x200, scoped, tag = 'scoped memory for mlp1_forward.1']
  %s0 = inlined_call_operand.vmem [shape: f32[512,1], index: 0, kind: input, shape index: {}]
  %s1 = inlined_call_operand.vmem [shape: f32[1,256], index: 1, kind: input, shape index: {}]
  %s2 = inlined_call_operand.vmem [shape: f32[1,256], index: 2, kind: input, shape index: {}]
  %s3 = inlined_call_operand.vmem [shape: bf16[256,256], index: 3, kind: input, shape index: {}]
  %s4 = inlined_call_operand.vmem [shape: f32[1,256], index: 4, kind: input, shape index: {}]
  %s5 = inlined_call_operand.vmem [shape: bf16[256,256], index: 5, kind: input, shape index: {}]
  %s6 = inlined_call_operand.vmem [shape: f32[1,256], index: 6, kind: input, shape index: {}]
  %s7 = inlined_call_operand.vmem [shape: bf16[256,256], index: 7, kind: input, shape index: {}]
  %s8 = inlined_call_operand.vmem [shape: f32[1,256], index: 8, kind: input, shape index: {}]
  %s9 = inlined_call_operand.vmem [shape: f32[1,256], index: 9, kind: input, shape index: {}]
  %s10 = inlined_call_operand.<no memory space> [shape: f32[1,1], index: 10, kind: input, shape index: {}]
  %s11 = inlined_call_operand.vmem [shape: f32[512,1], index: 11, kind: output, shape index: {}]
  %s12 = sld [smem:[#allocation0]]
  $region77: #{mlp1_forward.1} parent=0
    _
  %s14 = ssub.s32 1, %s12
  %s15 = scalar_select 0, %s14, %s12
  %16 = sst [smem:[#allocation2]] %s10
  loop: start=0, step=1, limit=4
  $region2: #{mlp1_forward.1} parent=0 // loop_pre_header
    _
  $region3: #{mlp1_forward.1} parent=0 // loop_header
    %s18 = sphi 0, %s22
    %p19 = scmp.ge.s32.totalorder %s18, 4
    %s28 = sphi 0, %s30
    %s31 = sphi 0, %s28
    %s32 = sphi 0, %s31
    %s48 = sphi 0, %s32
    %s52 = sphi 0, %s52
    %s54 = sphi 0, %s52
    %s55 = sphi 0, %s54
    %s69 = sphi 0, %s55
    %s73 = sphi 0, %s73
    %s75 = sphi 0, %s73
    %s76 = sphi 0, %s75
    %s90 = sphi 0, %s76
    %s94 = sphi 0, %s94
    %s96 = sphi 0, %s94
    %s97 = sphi 0, %s96
    %s111 = sphi 0, %s97
    %s115 = sphi 0, %s115
    %s117 = sphi 0, %s115
    %s118 = sphi 0, %s117
    %s132 = sphi 0, %s118
    %s136 = sphi 0, %s136
    %s138 = sphi 0, %s136
    %s139 = sphi 0, %s138
    %s153 = sphi 0, %s139
    %s157 = sphi 0, %s157
    %s159 = sphi 0, %s157
    %s160 = sphi 0, %s159
    %s174 = sphi 0, %s160
    %s178 = sphi 0, %s178
    %s180 = sphi 0, %s178
    %s181 = sphi 0, %s180
    %s195 = sphi 0, %s181
    %s199 = sphi 0, %s199
    %s201 = sphi 0, %s199
    %s202 = sphi 0, %s201
    %s216 = sphi 0, %s202
    %s220 = sphi 0, %s220
    %s222 = sphi 0, %s220
    %s223 = sphi 0, %s222
    %s237 = sphi 0, %s223
    %s241 = sphi 0, %s241
    %s243 = sphi 0, %s241
    %s244 = sphi 0, %s243
    %s258 = sphi 0, %s244
    %s264 = sphi 0, %s266
    %s267 = sphi 0, %s264
    %s268 = sphi 0, %s267
    %s284 = sphi 0, %s268
  $region4: #{mlp1_forward.1} parent=0 // loop_header_branch
    %21 = sbr.rel (%p19) target = $region8
  $region5: #{mlp1_forward.1} parent=0 // loop_body
    %s23 = ssub.s32 %s18, 1
    %s24 = ssub.s32 %s18, 2
    %s25 = sadd.s32 %s18, 1
    %s26 = ssub.s32 %s18, %s25
    %p27 = scmp.eq.s32.totalorder %s26, 0
    %s29 = sadd.s32 %s28, 1
    %s30 = scalar_select %p27, %s28, %s29
    %p33 = pneg %p27
    %p34 = scmp.eq.s32.totalorder %s18, 1
    %p35 = por %p33, %p34
    %p36 = scmp.ne.s32.totalorder %s28, %s31
    %p37 = scmp.eq.s32.totalorder %s18, 0
    %p38 = por %p36, %p37
    %p39 = scmp.ne.s32.totalorder %s28, %s31
    %p40 = scmp.eq.s32.totalorder %s23, 1
    %p41 = por %p39, %p40
    %p42 = scmp.ne.s32.totalorder %s31, %s32
    %p43 = scmp.eq.s32.totalorder %s23, 0
    %p44 = por %p42, %p43
    %p45 = scmp.ne.s32.totalorder %s31, %s32
    %p46 = scmp.eq.s32.totalorder %s24, 1
    %p47 = por %p45, %p46
    %p49 = scmp.ne.s32.totalorder %s32, %s48
    %p50 = scmp.eq.s32.totalorder %s24, 0
    %p51 = por %p49, %p50
    %s53 = sadd.s32 %s52, 1
    %p56 = scmp.eq.s32.totalorder %s18, 1
    %p57 = scmp.ne.s32.totalorder %s52, %s54
    %p58 = scmp.eq.s32.totalorder %s18, 0
    %p59 = por %p57, %p58
    %p60 = scmp.ne.s32.totalorder %s52, %s54
    %p61 = scmp.eq.s32.totalorder %s23, 1
    %p62 = por %p60, %p61
    %p63 = scmp.ne.s32.totalorder %s54, %s55
    %p64 = scmp.eq.s32.totalorder %s23, 0
    %p65 = por %p63, %p64
    %p66 = scmp.ne.s32.totalorder %s54, %s55
    %p67 = scmp.eq.s32.totalorder %s24, 1
    %p68 = por %p66, %p67
    %p70 = scmp.ne.s32.totalorder %s55, %s69
    %p71 = scmp.eq.s32.totalorder %s24, 0
    %p72 = por %p70, %p71
    %s74 = sadd.s32 %s73, 1
    %p77 = scmp.eq.s32.totalorder %s18, 1
    %p78 = scmp.ne.s32.totalorder %s73, %s75
    %p79 = scmp.eq.s32.totalorder %s18, 0
    %p80 = por %p78, %p79
    %p81 = scmp.ne.s32.totalorder %s73, %s75
    %p82 = scmp.eq.s32.totalorder %s23, 1
    %p83 = por %p81, %p82
    %p84 = scmp.ne.s32.totalorder %s75, %s76
    %p85 = scmp.eq.s32.totalorder %s23, 0
    %p86 = por %p84, %p85
    %p87 = scmp.ne.s32.totalorder %s75, %s76
    %p88 = scmp.eq.s32.totalorder %s24, 1
    %p89 = por %p87, %p88
    %p91 = scmp.ne.s32.totalorder %s76, %s90
    %p92 = scmp.eq.s32.totalorder %s24, 0
    %p93 = por %p91, %p92
    %s95 = sadd.s32 %s94, 1
    %p98 = scmp.eq.s32.totalorder %s18, 1
    %p99 = scmp.ne.s32.totalorder %s94, %s96
    %p100 = scmp.eq.s32.totalorder %s18, 0
    %p101 = por %p99, %p100
    %p102 = scmp.ne.s32.totalorder %s94, %s96
    %p103 = scmp.eq.s32.totalorder %s23, 1
    %p104 = por %p102, %p103
    %p105 = scmp.ne.s32.totalorder %s96, %s97
    %p106 = scmp.eq.s32.totalorder %s23, 0
    %p107 = por %p105, %p106
    %p108 = scmp.ne.s32.totalorder %s96, %s97
    %p109 = scmp.eq.s32.totalorder %s24, 1
    %p110 = por %p108, %p109
    %p112 = scmp.ne.s32.totalorder %s97, %s111
    %p113 = scmp.eq.s32.totalorder %s24, 0
    %p114 = por %p112, %p113
    %s116 = sadd.s32 %s115, 1
    %p119 = scmp.eq.s32.totalorder %s18, 1
    %p120 = scmp.ne.s32.totalorder %s115, %s117
    %p121 = scmp.eq.s32.totalorder %s18, 0
    %p122 = por %p120, %p121
    %p123 = scmp.ne.s32.totalorder %s115, %s117
    %p124 = scmp.eq.s32.totalorder %s23, 1
    %p125 = por %p123, %p124
    %p126 = scmp.ne.s32.totalorder %s117, %s118
    %p127 = scmp.eq.s32.totalorder %s23, 0
    %p128 = por %p126, %p127
    %p129 = scmp.ne.s32.totalorder %s117, %s118
    %p130 = scmp.eq.s32.totalorder %s24, 1
    %p131 = por %p129, %p130
    %p133 = scmp.ne.s32.totalorder %s118, %s132
    %p134 = scmp.eq.s32.totalorder %s24, 0
    %p135 = por %p133, %p134
    %s137 = sadd.s32 %s136, 1
    %p140 = scmp.eq.s32.totalorder %s18, 1
    %p141 = scmp.ne.s32.totalorder %s136, %s138
    %p142 = scmp.eq.s32.totalorder %s18, 0
    %p143 = por %p141, %p142
    %p144 = scmp.ne.s32.totalorder %s136, %s138
    %p145 = scmp.eq.s32.totalorder %s23, 1
    %p146 = por %p144, %p145
    %p147 = scmp.ne.s32.totalorder %s138, %s139
    %p148 = scmp.eq.s32.totalorder %s23, 0
    %p149 = por %p147, %p148
    %p150 = scmp.ne.s32.totalorder %s138, %s139
    %p151 = scmp.eq.s32.totalorder %s24, 1
    %p152 = por %p150, %p151
    %p154 = scmp.ne.s32.totalorder %s139, %s153
    %p155 = scmp.eq.s32.totalorder %s24, 0
    %p156 = por %p154, %p155
    %s158 = sadd.s32 %s157, 1
    %p161 = scmp.eq.s32.totalorder %s18, 1
    %p162 = scmp.ne.s32.totalorder %s157, %s159
    %p163 = scmp.eq.s32.totalorder %s18, 0
    %p164 = por %p162, %p163
    %p165 = scmp.ne.s32.totalorder %s157, %s159
    %p166 = scmp.eq.s32.totalorder %s23, 1
    %p167 = por %p165, %p166
    %p168 = scmp.ne.s32.totalorder %s159, %s160
    %p169 = scmp.eq.s32.totalorder %s23, 0
    %p170 = por %p168, %p169
    %p171 = scmp.ne.s32.totalorder %s159, %s160
    %p172 = scmp.eq.s32.totalorder %s24, 1
    %p173 = por %p171, %p172
    %p175 = scmp.ne.s32.totalorder %s160, %s174
    %p176 = scmp.eq.s32.totalorder %s24, 0
    %p177 = por %p175, %p176
    %s179 = sadd.s32 %s178, 1
    %p182 = scmp.eq.s32.totalorder %s18, 1
    %p183 = scmp.ne.s32.totalorder %s178, %s180
    %p184 = scmp.eq.s32.totalorder %s18, 0
    %p185 = por %p183, %p184
    %p186 = scmp.ne.s32.totalorder %s178, %s180
    %p187 = scmp.eq.s32.totalorder %s23, 1
    %p188 = por %p186, %p187
    %p189 = scmp.ne.s32.totalorder %s180, %s181
    %p190 = scmp.eq.s32.totalorder %s23, 0
    %p191 = por %p189, %p190
    %p192 = scmp.ne.s32.totalorder %s180, %s181
    %p193 = scmp.eq.s32.totalorder %s24, 1
    %p194 = por %p192, %p193
    %p196 = scmp.ne.s32.totalorder %s181, %s195
    %p197 = scmp.eq.s32.totalorder %s24, 0
    %p198 = por %p196, %p197
    %s200 = sadd.s32 %s199, 1
    %p203 = scmp.eq.s32.totalorder %s18, 1
    %p204 = scmp.ne.s32.totalorder %s199, %s201
    %p205 = scmp.eq.s32.totalorder %s18, 0
    %p206 = por %p204, %p205
    %p207 = scmp.ne.s32.totalorder %s199, %s201
    %p208 = scmp.eq.s32.totalorder %s23, 1
    %p209 = por %p207, %p208
    %p210 = scmp.ne.s32.totalorder %s201, %s202
    %p211 = scmp.eq.s32.totalorder %s23, 0
    %p212 = por %p210, %p211
    %p213 = scmp.ne.s32.totalorder %s201, %s202
    %p214 = scmp.eq.s32.totalorder %s24, 1
    %p215 = por %p213, %p214
    %p217 = scmp.ne.s32.totalorder %s202, %s216
    %p218 = scmp.eq.s32.totalorder %s24, 0
    %p219 = por %p217, %p218
    %s221 = sadd.s32 %s220, 1
    %p224 = scmp.eq.s32.totalorder %s18, 1
    %p225 = scmp.ne.s32.totalorder %s220, %s222
    %p226 = scmp.eq.s32.totalorder %s18, 0
    %p227 = por %p225, %p226
    %p228 = scmp.ne.s32.totalorder %s220, %s222
    %p229 = scmp.eq.s32.totalorder %s23, 1
    %p230 = por %p228, %p229
    %p231 = scmp.ne.s32.totalorder %s222, %s223
    %p232 = scmp.eq.s32.totalorder %s23, 0
    %p233 = por %p231, %p232
    %p234 = scmp.ne.s32.totalorder %s222, %s223
    %p235 = scmp.eq.s32.totalorder %s24, 1
    %p236 = por %p234, %p235
    %p238 = scmp.ne.s32.totalorder %s223, %s237
    %p239 = scmp.eq.s32.totalorder %s24, 0
    %p240 = por %p238, %p239
    %s242 = sadd.s32 %s241, 1
    %p245 = scmp.eq.s32.totalorder %s18, 1
    %p246 = scmp.ne.s32.totalorder %s241, %s243
    %p247 = scmp.eq.s32.totalorder %s18, 0
    %p248 = por %p246, %p247
    %p249 = scmp.ne.s32.totalorder %s241, %s243
    %p250 = scmp.eq.s32.totalorder %s23, 1
    %p251 = por %p249, %p250
    %p252 = scmp.ne.s32.totalorder %s243, %s244
    %p253 = scmp.eq.s32.totalorder %s23, 0
    %p254 = por %p252, %p253
    %p255 = scmp.ne.s32.totalorder %s243, %s244
    %p256 = scmp.eq.s32.totalorder %s24, 1
    %p257 = por %p255, %p256
    %p259 = scmp.ne.s32.totalorder %s244, %s258
    %p260 = scmp.eq.s32.totalorder %s24, 0
    %p261 = por %p259, %p260
    %s262 = ssub.s32 %s18, %s25
    %p263 = scmp.eq.s32.totalorder %s262, 0
    %s265 = sadd.s32 %s264, 1
    %s266 = scalar_select %p263, %s264, %s265
    %p269 = pneg %p263
    %p270 = scmp.eq.s32.totalorder %s18, 1
    %p271 = por %p269, %p270
    %p272 = scmp.ne.s32.totalorder %s264, %s267
    %p273 = scmp.eq.s32.totalorder %s18, 0
    %p274 = por %p272, %p273
    %p275 = scmp.ne.s32.totalorder %s264, %s267
    %p276 = scmp.eq.s32.totalorder %s23, 1
    %p277 = por %p275, %p276
    %p278 = scmp.ne.s32.totalorder %s267, %s268
    %p279 = scmp.eq.s32.totalorder %s23, 0
    %p280 = por %p278, %p279
    %p281 = scmp.ne.s32.totalorder %s267, %s268
    %p282 = scmp.eq.s32.totalorder %s24, 1
    %p283 = por %p281, %p282
    %p285 = scmp.ne.s32.totalorder %s268, %s284
    %p286 = scmp.eq.s32.totalorder %s24, 0
    %p287 = por %p285, %p286
    %p288 = scmp.le.s32.totalorder 1, %s18
    %p289 = scmp.lt.s32.totalorder %s18, 3
    %p290 = pnand %p288, %p289
    %p291 = pneg %p290
    // Predicated region
    $region9: #{mlp1_forward.1} parent=5 // pred_check
      _
    $region10: #{mlp1_forward.1} parent=5 // pred_check_branch
      %293 = sbr.rel (%p290) target = $region12
    $region11: #{mlp1_forward.1} parent=5 // pred_region
      %s294 = ssub.s32 %s18, 1
      // Predicated region
      $region13: #{mlp1_forward.1} parent=11 // pred_check
        %p295 = pneg %p65
      $region14: #{mlp1_forward.1} parent=11 // pred_check_branch
        %297 = sbr.rel (%p295) target = $region16
      $region15: #{mlp1_forward.1} parent=11 // pred_region
        _
      $region16: #{mlp1_forward.1} parent=11 // pred_fallthru
        _
      // Predicated region
      $region17: #{mlp1_forward.1} parent=11 // pred_check
        %p298 = pneg %p86
      $region18: #{mlp1_forward.1} parent=11 // pred_check_branch
        %300 = sbr.rel (%p298) target = $region20
      $region19: #{mlp1_forward.1} parent=11 // pred_region
        _
      $region20: #{mlp1_forward.1} parent=11 // pred_fallthru
        _
      // Predicated region
      $region21: #{mlp1_forward.1} parent=11 // pred_check
        %p301 = pneg %p107
      $region22: #{mlp1_forward.1} parent=11 // pred_check_branch
        %303 = sbr.rel (%p301) target = $region24
      $region23: #{mlp1_forward.1} parent=11 // pred_region
        _
      $region24: #{mlp1_forward.1} parent=11 // pred_fallthru
        _
      // Predicated region
      $region25: #{mlp1_forward.1} parent=11 // pred_check
        %p304 = pneg %p128
      $region26: #{mlp1_forward.1} parent=11 // pred_check_branch
        %306 = sbr.rel (%p304) target = $region28
      $region27: #{mlp1_forward.1} parent=11 // pred_region
        _
      $region28: #{mlp1_forward.1} parent=11 // pred_fallthru
        _
      // Predicated region
      $region29: #{mlp1_forward.1} parent=11 // pred_check
        %p307 = pneg %p149
      $region30: #{mlp1_forward.1} parent=11 // pred_check_branch
        %309 = sbr.rel (%p307) target = $region32
      $region31: #{mlp1_forward.1} parent=11 // pred_region
        _
      $region32: #{mlp1_forward.1} parent=11 // pred_fallthru
        _
      // Predicated region
      $region33: #{mlp1_forward.1} parent=11 // pred_check
        %p310 = pneg %p170
      $region34: #{mlp1_forward.1} parent=11 // pred_check_branch
        %312 = sbr.rel (%p310) target = $region36
      $region35: #{mlp1_forward.1} parent=11 // pred_region
        _
      $region36: #{mlp1_forward.1} parent=11 // pred_fallthru
        _
      // Predicated region
      $region37: #{mlp1_forward.1} parent=11 // pred_check
        %p313 = pneg %p191
      $region38: #{mlp1_forward.1} parent=11 // pred_check_branch
        %315 = sbr.rel (%p313) target = $region40
      $region39: #{mlp1_forward.1} parent=11 // pred_region
        _
      $region40: #{mlp1_forward.1} parent=11 // pred_fallthru
        _
      // Predicated region
      $region41: #{mlp1_forward.1} parent=11 // pred_check
        %p316 = pneg %p212
      $region42: #{mlp1_forward.1} parent=11 // pred_check_branch
        %318 = sbr.rel (%p316) target = $region44
      $region43: #{mlp1_forward.1} parent=11 // pred_region
        _
      $region44: #{mlp1_forward.1} parent=11 // pred_fallthru
        _
      // Predicated region
      $region45: #{mlp1_forward.1} parent=11 // pred_check
        %p319 = pneg %p233
      $region46: #{mlp1_forward.1} parent=11 // pred_check_branch
        %321 = sbr.rel (%p319) target = $region48
      $region47: #{mlp1_forward.1} parent=11 // pred_region
        _
      $region48: #{mlp1_forward.1} parent=11 // pred_fallthru
        _
      // Predicated region
      $region49: #{mlp1_forward.1} parent=11 // pred_check
        %p322 = pneg %p254
      $region50: #{mlp1_forward.1} parent=11 // pred_check_branch
        %324 = sbr.rel (%p322) target = $region52
      $region51: #{mlp1_forward.1} parent=11 // pred_region
        _
      $region52: #{mlp1_forward.1} parent=11 // pred_fallthru
        _
    $region12: #{mlp1_forward.1} parent=5 // pred_fallthru
      _
    %p325 = scmp.lt.s32.totalorder %s18, 2
    // Predicated region
    $region53: #{mlp1_forward.1} parent=5 // pred_check
      %p326 = pneg %p325
    $region54: #{mlp1_forward.1} parent=5 // pred_check_branch
      %328 = sbr.rel (%p326) target = $region56
    $region55: #{mlp1_forward.1} parent=5 // pred_region
      // Predicated region
      $region57: #{mlp1_forward.1} parent=55 // pred_check
        %p329 = pneg %p38
      $region58: #{mlp1_forward.1} parent=55 // pred_check_branch
        %331 = sbr.rel (%p329) target = $region60
      $region59: #{mlp1_forward.1} parent=55 // pred_region
        %s332 = smul.u32 32, %s18
        %p333 = scmp.lt.s32.totalorder %s332, 63
        %s334 = scalar_select %p333, %s332, 63
        %s335 = smul.addr %s334, 8
        %s336 = scalar_lea.vmem %s0, %s335
        %s337 = smul.u32 32, %s18
      $region60: #{mlp1_forward.1} parent=55 // pred_fallthru
        _
    $region56: #{mlp1_forward.1} parent=5 // pred_fallthru
      _
    %p338 = scmp.le.s32.totalorder 1, %s18
    %p339 = scmp.lt.s32.totalorder %s18, 3
    %p340 = pnand %p338, %p339
    %p341 = pneg %p340
    // Predicated region
    $region61: #{mlp1_forward.1} parent=5 // pred_check
      _
    $region62: #{mlp1_forward.1} parent=5 // pred_check_branch
      %343 = sbr.rel (%p340) target = $region64
    $region63: #{mlp1_forward.1} parent=5 // pred_region
      %s344 = ssub.s32 %s18, 1
      %s345 = smul.u32 32, %s23
      %p346 = scmp.lt.s32.totalorder %s345, 63
      %s347 = scalar_select %p346, %s345, 63
      %s348 = smul.addr %s347, 8
      %s349 = scalar_lea.vmem %s0, %s348
      %p350 = pneg %p44
      %p351 = pneg %p41
      %p352 = pneg %p65
      %p353 = pneg %p62
      %p354 = pneg %p86
      %p355 = pneg %p83
      %p356 = pneg %p107
      %p357 = pneg %p104
      %p358 = pneg %p128
      %p359 = pneg %p125
      %p360 = pneg %p149
      %p361 = pneg %p146
      %p362 = pneg %p170
      %p363 = pneg %p167
      %p364 = pneg %p191
      %p365 = pneg %p188
      %p366 = pneg %p212
      %p367 = pneg %p209
      %p368 = pneg %p233
      %p369 = pneg %p230
      %p370 = pneg %p254
      %p371 = pneg %p251
      %p372 = pneg %p280
      %p373 = pneg %p277
      %s374 = smul.u32 32, %s23
      %p375 = scmp.lt.s32.totalorder %s374, 63
      %s376 = scalar_select %p375, %s374, 63
      %s377 = smul.addr %s376, 8
      %s378 = scalar_lea.vmem %s11, %s377
      %s379 = smul.u32 32, %s23
      %p380 = scmp.lt.s32.totalorder %s379, 63
      %s381 = scalar_select %p380, %s379, 63
      %s382 = smul.addr %s381, 8
      %s383 = scalar_lea.vmem %s0, %s382
      %s384 = smul.u32 32, %s23
      %s385 = smul.u32 32, %s23
      %p386 = scmp.lt.s32.totalorder %s385, 63
      %s387 = scalar_select %p386, %s385, 63
      %s388 = smul.addr %s387, 8
      %s389 = scalar_lea.vmem %s11, %s388
      %s390 = smul.u32 32, %s23
      %v391 = vld [vmem:[%s383] sm:$0xff]
      %v392 = vld [vmem:[%s383 + $0x8] sm:$0xff]
      %v393 = vld [vmem:[%s383 + $0x10] sm:$0xff]
      %v394 = vld [vmem:[%s383 + $0x18] sm:$0xff]
      %v395 = vld [vmem:[%s383 + $0x20] sm:$0xff]
      %v396 = vld [vmem:[%s383 + $0x28] sm:$0xff]
      %v397 = vld [vmem:[%s383 + $0x30] sm:$0xff]
      %v398 = vld [vmem:[%s383 + $0x38] sm:$0xff]
      %v399 = vld [vmem:[%s383 + $0x40] sm:$0xff]
      %v400 = vld [vmem:[%s383 + $0x48] sm:$0xff]
      %v401 = vld [vmem:[%s383 + $0x50] sm:$0xff]
      %v402 = vld [vmem:[%s383 + $0x58] sm:$0xff]
      %v403 = vld [vmem:[%s383 + $0x60] sm:$0xff]
      %v404 = vld [vmem:[%s383 + $0x68] sm:$0xff]
      %v405 = vld [vmem:[%s383 + $0x70] sm:$0xff]
      %v406 = vld [vmem:[%s383 + $0x78] sm:$0xff]
      %v407 = vld [vmem:[%s383 + $0x80] sm:$0xff]
      %v408 = vld [vmem:[%s383 + $0x88] sm:$0xff]
      %v409 = vld [vmem:[%s383 + $0x90] sm:$0xff]
      %v410 = vld [vmem:[%s383 + $0x98] sm:$0xff]
      %v411 = vld [vmem:[%s383 + $0xa0] sm:$0xff]
      %v412 = vld [vmem:[%s383 + $0xa8] sm:$0xff]
      %v413 = vld [vmem:[%s383 + $0xb0] sm:$0xff]
      %v414 = vld [vmem:[%s383 + $0xb8] sm:$0xff]
      %v415 = vld [vmem:[%s383 + $0xc0] sm:$0xff]
      %v416 = vld [vmem:[%s383 + $0xc8] sm:$0xff]
      %v417 = vld [vmem:[%s383 + $0xd0] sm:$0xff]
      %v418 = vld [vmem:[%s383 + $0xd8] sm:$0xff]
      %v419 = vld [vmem:[%s383 + $0xe0] sm:$0xff]
      %v420 = vld [vmem:[%s383 + $0xe8] sm:$0xff]
      %v421 = vld [vmem:[%s383 + $0xf0] sm:$0xff]
      %v422 = vld [vmem:[%s383 + $0xf8] sm:$0xff]
      %v423 = vld [vmem:[%s1] sm:$0x3]
      %425 = vset.pattern.permute.xlu0 0
      %426 = vperm.xlu0 %425, %v391
      %v427 = vpop.permute.xlu0 %426
      %430 = vset.pattern.permute.xlu0 0
      %431 = vperm.xlu0 %430, %v392
      %v432 = vpop.permute.xlu0 %431
      %435 = vset.pattern.permute.xlu0 0
      %436 = vperm.xlu0 %435, %v393
      %v437 = vpop.permute.xlu0 %436
      %440 = vset.pattern.permute.xlu0 0
      %441 = vperm.xlu0 %440, %v394
      %v442 = vpop.permute.xlu0 %441
      %445 = vset.pattern.permute.xlu0 0
      %446 = vperm.xlu0 %445, %v395
      %v447 = vpop.permute.xlu0 %446
      %450 = vset.pattern.permute.xlu0 0
      %451 = vperm.xlu0 %450, %v396
      %v452 = vpop.permute.xlu0 %451
      %455 = vset.pattern.permute.xlu0 0
      %456 = vperm.xlu0 %455, %v397
      %v457 = vpop.permute.xlu0 %456
      %460 = vset.pattern.permute.xlu0 0
      %461 = vperm.xlu0 %460, %v398
      %v462 = vpop.permute.xlu0 %461
      %465 = vset.pattern.permute.xlu0 0
      %466 = vperm.xlu0 %465, %v399
      %v467 = vpop.permute.xlu0 %466
      %470 = vset.pattern.permute.xlu0 0
      %471 = vperm.xlu0 %470, %v400
      %v472 = vpop.permute.xlu0 %471
      %475 = vset.pattern.permute.xlu0 0
      %476 = vperm.xlu0 %475, %v401
      %v477 = vpop.permute.xlu0 %476
      %480 = vset.pattern.permute.xlu0 0
      %481 = vperm.xlu0 %480, %v402
      %v482 = vpop.permute.xlu0 %481
      %485 = vset.pattern.permute.xlu0 0
      %486 = vperm.xlu0 %485, %v403
      %v487 = vpop.permute.xlu0 %486
      %490 = vset.pattern.permute.xlu0 0
      %491 = vperm.xlu0 %490, %v404
      %v492 = vpop.permute.xlu0 %491
      %495 = vset.pattern.permute.xlu0 0
      %496 = vperm.xlu0 %495, %v405
      %v497 = vpop.permute.xlu0 %496
      %500 = vset.pattern.permute.xlu0 0
      %501 = vperm.xlu0 %500, %v406
      %v502 = vpop.permute.xlu0 %501
      %505 = vset.pattern.permute.xlu0 0
      %506 = vperm.xlu0 %505, %v407
      %v507 = vpop.permute.xlu0 %506
      %510 = vset.pattern.permute.xlu0 0
      %511 = vperm.xlu0 %510, %v408
      %v512 = vpop.permute.xlu0 %511
      %515 = vset.pattern.permute.xlu0 0
      %516 = vperm.xlu0 %515, %v409
      %v517 = vpop.permute.xlu0 %516
      %520 = vset.pattern.permute.xlu0 0
      %521 = vperm.xlu0 %520, %v410
      %v522 = vpop.permute.xlu0 %521
      %525 = vset.pattern.permute.xlu0 0
      %526 = vperm.xlu0 %525, %v411
      %v527 = vpop.permute.xlu0 %526
      %530 = vset.pattern.permute.xlu0 0
      %531 = vperm.xlu0 %530, %v412
      %v532 = vpop.permute.xlu0 %531
      %535 = vset.pattern.permute.xlu0 0
      %536 = vperm.xlu0 %535, %v413
      %v537 = vpop.permute.xlu0 %536
      %540 = vset.pattern.permute.xlu0 0
      %541 = vperm.xlu0 %540, %v414
      %v542 = vpop.permute.xlu0 %541
      %545 = vset.pattern.permute.xlu0 0
      %546 = vperm.xlu0 %545, %v415
      %v547 = vpop.permute.xlu0 %546
      %550 = vset.pattern.permute.xlu0 0
      %551 = vperm.xlu0 %550, %v416
      %v552 = vpop.permute.xlu0 %551
      %555 = vset.pattern.permute.xlu0 0
      %556 = vperm.xlu0 %555, %v417
      %v557 = vpop.permute.xlu0 %556
      %560 = vset.pattern.permute.xlu0 0
      %561 = vperm.xlu0 %560, %v418
      %v562 = vpop.permute.xlu0 %561
      %565 = vset.pattern.permute.xlu0 0
      %566 = vperm.xlu0 %565, %v419
      %v567 = vpop.permute.xlu0 %566
      %570 = vset.pattern.permute.xlu0 0
      %571 = vperm.xlu0 %570, %v420
      %v572 = vpop.permute.xlu0 %571
      %575 = vset.pattern.permute.xlu0 0
      %576 = vperm.xlu0 %575, %v421
      %v577 = vpop.permute.xlu0 %576
      %580 = vset.pattern.permute.xlu0 0
      %581 = vperm.xlu0 %580, %v422
      %v582 = vpop.permute.xlu0 %581
      %v585 = vperm.slane %v423, 0
      %v586 = vperm.slane %v423, 1
      %v589 = vmul.f32 %v427, %v585
      %v590 = vmul.f32 %v427, %v586
      %v591 = vmul.f32 %v432, %v585
      %v592 = vmul.f32 %v432, %v586
      %v593 = vmul.f32 %v437, %v585
      %v594 = vmul.f32 %v437, %v586
      %v595 = vmul.f32 %v442, %v585
      %v596 = vmul.f32 %v442, %v586
      %v597 = vmul.f32 %v447, %v585
      %v598 = vmul.f32 %v447, %v586
      %v599 = vmul.f32 %v452, %v585
      %v600 = vmul.f32 %v452, %v586
      %v601 = vmul.f32 %v457, %v585
      %v602 = vmul.f32 %v457, %v586
      %v603 = vmul.f32 %v462, %v585
      %v604 = vmul.f32 %v462, %v586
      %v605 = vmul.f32 %v467, %v585
      %v606 = vmul.f32 %v467, %v586
      %v607 = vmul.f32 %v472, %v585
      %v608 = vmul.f32 %v472, %v586
      %v609 = vmul.f32 %v477, %v585
      %v610 = vmul.f32 %v477, %v586
      %v611 = vmul.f32 %v482, %v585
      %v612 = vmul.f32 %v482, %v586
      %v613 = vmul.f32 %v487, %v585
      %v614 = vmul.f32 %v487, %v586
      %v615 = vmul.f32 %v492, %v585
      %v616 = vmul.f32 %v492, %v586
      %v617 = vmul.f32 %v497, %v585
      %v618 = vmul.f32 %v497, %v586
      %v619 = vmul.f32 %v502, %v585
      %v620 = vmul.f32 %v502, %v586
      %v621 = vmul.f32 %v507, %v585
      %v622 = vmul.f32 %v507, %v586
      %v623 = vmul.f32 %v512, %v585
      %v624 = vmul.f32 %v512, %v586
      %v625 = vmul.f32 %v517, %v585
      %v626 = vmul.f32 %v517, %v586
      %v627 = vmul.f32 %v522, %v585
      %v628 = vmul.f32 %v522, %v586
      %v629 = vmul.f32 %v527, %v585
      %v630 = vmul.f32 %v527, %v586
      %v631 = vmul.f32 %v532, %v585
      %v632 = vmul.f32 %v532, %v586
      %v633 = vmul.f32 %v537, %v585
      %v634 = vmul.f32 %v537, %v586
      %v635 = vmul.f32 %v542, %v585
      %v636 = vmul.f32 %v542, %v586
      %v637 = vmul.f32 %v547, %v585
      %v638 = vmul.f32 %v547, %v586
      %v639 = vmul.f32 %v552, %v585
      %v640 = vmul.f32 %v552, %v586
      %v641 = vmul.f32 %v557, %v585
      %v642 = vmul.f32 %v557, %v586
      %v643 = vmul.f32 %v562, %v585
      %v644 = vmul.f32 %v562, %v586
      %v645 = vmul.f32 %v567, %v585
      %v646 = vmul.f32 %v567, %v586
      %v647 = vmul.f32 %v572, %v585
      %v648 = vmul.f32 %v572, %v586
      %v649 = vmul.f32 %v577, %v585
      %v650 = vmul.f32 %v577, %v586
      %v651 = vmul.f32 %v582, %v585
      %v652 = vmul.f32 %v582, %v586
      %v653 = vld [vmem:[%s2] sm:$0x3]
      %v655 = vperm.slane %v653, 0
      %v656 = vperm.slane %v653, 1
      %v659 = vadd.f32 %v589, %v655
      %v660 = vadd.f32 %v590, %v656
      %v661 = vadd.f32 %v591, %v655
      %v662 = vadd.f32 %v592, %v656
      %v663 = vadd.f32 %v593, %v655
      %v664 = vadd.f32 %v594, %v656
      %v665 = vadd.f32 %v595, %v655
      %v666 = vadd.f32 %v596, %v656
      %v667 = vadd.f32 %v597, %v655
      %v668 = vadd.f32 %v598, %v656
      %v669 = vadd.f32 %v599, %v655
      %v670 = vadd.f32 %v600, %v656
      %v671 = vadd.f32 %v601, %v655
      %v672 = vadd.f32 %v602, %v656
      %v673 = vadd.f32 %v603, %v655
      %v674 = vadd.f32 %v604, %v656
      %v675 = vadd.f32 %v605, %v655
      %v676 = vadd.f32 %v606, %v656
      %v677 = vadd.f32 %v607, %v655
      %v678 = vadd.f32 %v608, %v656
      %v679 = vadd.f32 %v609, %v655
      %v680 = vadd.f32 %v610, %v656
      %v681 = vadd.f32 %v611, %v655
      %v682 = vadd.f32 %v612, %v656
      %v683 = vadd.f32 %v613, %v655
      %v684 = vadd.f32 %v614, %v656
      %v685 = vadd.f32 %v615, %v655
      %v686 = vadd.f32 %v616, %v656
      %v687 = vadd.f32 %v617, %v655
      %v688 = vadd.f32 %v618, %v656
      %v689 = vadd.f32 %v619, %v655
      %v690 = vadd.f32 %v620, %v656
      %v691 = vadd.f32 %v621, %v655
      %v692 = vadd.f32 %v622, %v656
      %v693 = vadd.f32 %v623, %v655
      %v694 = vadd.f32 %v624, %v656
      %v695 = vadd.f32 %v625, %v655
      %v696 = vadd.f32 %v626, %v656
      %v697 = vadd.f32 %v627, %v655
      %v698 = vadd.f32 %v628, %v656
      %v699 = vadd.f32 %v629, %v655
      %v700 = vadd.f32 %v630, %v656
      %v701 = vadd.f32 %v631, %v655
      %v702 = vadd.f32 %v632, %v656
      %v703 = vadd.f32 %v633, %v655
      %v704 = vadd.f32 %v634, %v656
      %v705 = vadd.f32 %v635, %v655
      %v706 = vadd.f32 %v636, %v656
      %v707 = vadd.f32 %v637, %v655
      %v708 = vadd.f32 %v638, %v656
      %v709 = vadd.f32 %v639, %v655
      %v710 = vadd.f32 %v640, %v656
      %v711 = vadd.f32 %v641, %v655
      %v712 = vadd.f32 %v642, %v656
      %v713 = vadd.f32 %v643, %v655
      %v714 = vadd.f32 %v644, %v656
      %v715 = vadd.f32 %v645, %v655
      %v716 = vadd.f32 %v646, %v656
      %v717 = vadd.f32 %v647, %v655
      %v718 = vadd.f32 %v648, %v656
      %v719 = vadd.f32 %v649, %v655
      %v720 = vadd.f32 %v650, %v656
      %v721 = vadd.f32 %v651, %v655
      %v722 = vadd.f32 %v652, %v656
      %v723 = vmax.f32 %v659, 0.0
      %v724 = vmax.f32 %v660, 0.0
      %v725 = vmax.f32 %v661, 0.0
      %v726 = vmax.f32 %v662, 0.0
      %v727 = vmax.f32 %v663, 0.0
      %v728 = vmax.f32 %v664, 0.0
      %v729 = vmax.f32 %v665, 0.0
      %v730 = vmax.f32 %v666, 0.0
      %v731 = vmax.f32 %v667, 0.0
      %v732 = vmax.f32 %v668, 0.0
      %v733 = vmax.f32 %v669, 0.0
      %v734 = vmax.f32 %v670, 0.0
      %v735 = vmax.f32 %v671, 0.0
      %v736 = vmax.f32 %v672, 0.0
      %v737 = vmax.f32 %v673, 0.0
      %v738 = vmax.f32 %v674, 0.0
      %v739 = vmax.f32 %v675, 0.0
      %v740 = vmax.f32 %v676, 0.0
      %v741 = vmax.f32 %v677, 0.0
      %v742 = vmax.f32 %v678, 0.0
      %v743 = vmax.f32 %v679, 0.0
      %v744 = vmax.f32 %v680, 0.0
      %v745 = vmax.f32 %v681, 0.0
      %v746 = vmax.f32 %v682, 0.0
      %v747 = vmax.f32 %v683, 0.0
      %v748 = vmax.f32 %v684, 0.0
      %v749 = vmax.f32 %v685, 0.0
      %v750 = vmax.f32 %v686, 0.0
      %v751 = vmax.f32 %v687, 0.0
      %v752 = vmax.f32 %v688, 0.0
      %v753 = vmax.f32 %v689, 0.0
      %v754 = vmax.f32 %v690, 0.0
      %v755 = vmax.f32 %v691, 0.0
      %v756 = vmax.f32 %v692, 0.0
      %v757 = vmax.f32 %v693, 0.0
      %v758 = vmax.f32 %v694, 0.0
      %v759 = vmax.f32 %v695, 0.0
      %v760 = vmax.f32 %v696, 0.0
      %v761 = vmax.f32 %v697, 0.0
      %v762 = vmax.f32 %v698, 0.0
      %v763 = vmax.f32 %v699, 0.0
      %v764 = vmax.f32 %v700, 0.0
      %v765 = vmax.f32 %v701, 0.0
      %v766 = vmax.f32 %v702, 0.0
      %v767 = vmax.f32 %v703, 0.0
      %v768 = vmax.f32 %v704, 0.0
      %v769 = vmax.f32 %v705, 0.0
      %v770 = vmax.f32 %v706, 0.0
      %v771 = vmax.f32 %v707, 0.0
      %v772 = vmax.f32 %v708, 0.0
      %v773 = vmax.f32 %v709, 0.0
      %v774 = vmax.f32 %v710, 0.0
      %v775 = vmax.f32 %v711, 0.0
      %v776 = vmax.f32 %v712, 0.0
      %v777 = vmax.f32 %v713, 0.0
      %v778 = vmax.f32 %v714, 0.0
      %v779 = vmax.f32 %v715, 0.0
      %v780 = vmax.f32 %v716, 0.0
      %v781 = vmax.f32 %v717, 0.0
      %v782 = vmax.f32 %v718, 0.0
      %v783 = vmax.f32 %v719, 0.0
      %v784 = vmax.f32 %v720, 0.0
      %v785 = vmax.f32 %v721, 0.0
      %v786 = vmax.f32 %v722, 0.0
      %v787 = vpack.c.bf16 %v725, %v723
      %v788 = vpack.c.bf16 %v726, %v724
      %v789 = vpack.c.bf16 %v729, %v727
      %v790 = vpack.c.bf16 %v730, %v728
      %v791 = vpack.c.bf16 %v733, %v731
      %v792 = vpack.c.bf16 %v734, %v732
      %v793 = vpack.c.bf16 %v737, %v735
      %v794 = vpack.c.bf16 %v738, %v736
      %v795 = vpack.c.bf16 %v741, %v739
      %v796 = vpack.c.bf16 %v742, %v740
      %v797 = vpack.c.bf16 %v745, %v743
      %v798 = vpack.c.bf16 %v746, %v744
      %v799 = vpack.c.bf16 %v749, %v747
      %v800 = vpack.c.bf16 %v750, %v748
      %v801 = vpack.c.bf16 %v753, %v751
      %v802 = vpack.c.bf16 %v754, %v752
      %v803 = vpack.c.bf16 %v757, %v755
      %v804 = vpack.c.bf16 %v758, %v756
      %v805 = vpack.c.bf16 %v761, %v759
      %v806 = vpack.c.bf16 %v762, %v760
      %v807 = vpack.c.bf16 %v765, %v763
      %v808 = vpack.c.bf16 %v766, %v764
      %v809 = vpack.c.bf16 %v769, %v767
      %v810 = vpack.c.bf16 %v770, %v768
      %v811 = vpack.c.bf16 %v773, %v771
      %v812 = vpack.c.bf16 %v774, %v772
      %v813 = vpack.c.bf16 %v777, %v775
      %v814 = vpack.c.bf16 %v778, %v776
      %v815 = vpack.c.bf16 %v781, %v779
      %v816 = vpack.c.bf16 %v782, %v780
      %v817 = vpack.c.bf16 %v785, %v783
      %v818 = vpack.c.bf16 %v786, %v784
      %v819 = vld [vmem:[%s3] sm:$0xff]
      %v820 = vld [vmem:[%s3 + $0x8] sm:$0xff]
      %v821 = vld [vmem:[%s3 + $0x10] sm:$0xff]
      %v822 = vld [vmem:[%s3 + $0x18] sm:$0xff]
      %v823 = vld [vmem:[%s3 + $0x20] sm:$0xff]
      %v824 = vld [vmem:[%s3 + $0x28] sm:$0xff]
      %v825 = vld [vmem:[%s3 + $0x30] sm:$0xff]
      %v826 = vld [vmem:[%s3 + $0x38] sm:$0xff]
      %v827 = vld [vmem:[%s3 + $0x40] sm:$0xff]
      %v828 = vld [vmem:[%s3 + $0x48] sm:$0xff]
      %v829 = vld [vmem:[%s3 + $0x50] sm:$0xff]
      %v830 = vld [vmem:[%s3 + $0x58] sm:$0xff]
      %v831 = vld [vmem:[%s3 + $0x60] sm:$0xff]
      %v832 = vld [vmem:[%s3 + $0x68] sm:$0xff]
      %v833 = vld [vmem:[%s3 + $0x70] sm:$0xff]
      %v834 = vld [vmem:[%s3 + $0x78] sm:$0xff]
      %v835 = vld [vmem:[%s3 + $0x80] sm:$0xff]
      %v836 = vld [vmem:[%s3 + $0x88] sm:$0xff]
      %v837 = vld [vmem:[%s3 + $0x90] sm:$0xff]
      %v838 = vld [vmem:[%s3 + $0x98] sm:$0xff]
      %v839 = vld [vmem:[%s3 + $0xa0] sm:$0xff]
      %v840 = vld [vmem:[%s3 + $0xa8] sm:$0xff]
      %v841 = vld [vmem:[%s3 + $0xb0] sm:$0xff]
      %v842 = vld [vmem:[%s3 + $0xb8] sm:$0xff]
      %v843 = vld [vmem:[%s3 + $0xc0] sm:$0xff]
      %v844 = vld [vmem:[%s3 + $0xc8] sm:$0xff]
      %v845 = vld [vmem:[%s3 + $0xd0] sm:$0xff]
      %v846 = vld [vmem:[%s3 + $0xd8] sm:$0xff]
      %v847 = vld [vmem:[%s3 + $0xe0] sm:$0xff]
      %v848 = vld [vmem:[%s3 + $0xe8] sm:$0xff]
      %v849 = vld [vmem:[%s3 + $0xf0] sm:$0xff]
      %v850 = vld [vmem:[%s3 + $0xf8] sm:$0xff]
      %v851 = vld [vmem:[%s4] sm:$0x3]
      %v853 = vperm.slane %v851, 0
      %v854 = vperm.slane %v851, 1
      %v889 = vunpack.c.l.b16 %v819
      %v890 = vunpack.c.h.b16 %v819
      %v891 = vunpack.c.l.b16 %v820
      %v892 = vunpack.c.h.b16 %v820
      %v893 = vunpack.c.l.b16 %v821
      %v894 = vunpack.c.h.b16 %v821
      %v895 = vunpack.c.l.b16 %v822
      %v896 = vunpack.c.h.b16 %v822
      %v897 = vunpack.c.l.b16 %v823
      %v898 = vunpack.c.h.b16 %v823
      %v899 = vunpack.c.l.b16 %v824
      %v900 = vunpack.c.h.b16 %v824
      %v901 = vunpack.c.l.b16 %v825
      %v902 = vunpack.c.h.b16 %v825
      %v903 = vunpack.c.l.b16 %v826
      %v904 = vunpack.c.h.b16 %v826
      %v905 = vunpack.c.l.b16 %v827
      %v906 = vunpack.c.h.b16 %v827
      %v907 = vunpack.c.l.b16 %v828
      %v908 = vunpack.c.h.b16 %v828
      %v909 = vunpack.c.l.b16 %v829
      %v910 = vunpack.c.h.b16 %v829
      %v911 = vunpack.c.l.b16 %v830
      %v912 = vunpack.c.h.b16 %v830
      %v913 = vunpack.c.l.b16 %v831
      %v914 = vunpack.c.h.b16 %v831
      %v915 = vunpack.c.l.b16 %v832
      %v916 = vunpack.c.h.b16 %v832
      %v917 = vunpack.c.l.b16 %v833
      %v918 = vunpack.c.h.b16 %v833
      %v919 = vunpack.c.l.b16 %v834
      %v920 = vunpack.c.h.b16 %v834
      %v921 = vunpack.c.l.b16 %v835
      %v922 = vunpack.c.h.b16 %v835
      %v923 = vunpack.c.l.b16 %v836
      %v924 = vunpack.c.h.b16 %v836
      %v925 = vunpack.c.l.b16 %v837
      %v926 = vunpack.c.h.b16 %v837
      %v927 = vunpack.c.l.b16 %v838
      %v928 = vunpack.c.h.b16 %v838
      %v929 = vunpack.c.l.b16 %v839
      %v930 = vunpack.c.h.b16 %v839
      %v931 = vunpack.c.l.b16 %v840
      %v932 = vunpack.c.h.b16 %v840
      %v933 = vunpack.c.l.b16 %v841
      %v934 = vunpack.c.h.b16 %v841
      %v935 = vunpack.c.l.b16 %v842
      %v936 = vunpack.c.h.b16 %v842
      %v937 = vunpack.c.l.b16 %v843
      %v938 = vunpack.c.h.b16 %v843
      %v939 = vunpack.c.l.b16 %v844
      %v940 = vunpack.c.h.b16 %v844
      %v941 = vunpack.c.l.b16 %v845
      %v942 = vunpack.c.h.b16 %v845
      %v943 = vunpack.c.l.b16 %v846
      %v944 = vunpack.c.h.b16 %v846
      %v945 = vunpack.c.l.b16 %v847
      %v946 = vunpack.c.h.b16 %v847
      %v947 = vunpack.c.l.b16 %v848
      %v948 = vunpack.c.h.b16 %v848
      %v949 = vunpack.c.l.b16 %v849
      %v950 = vunpack.c.h.b16 %v849
      %v951 = vunpack.c.l.b16 %v850
      %v952 = vunpack.c.h.b16 %v850
      %v953 = vpack.c.b16 %v891, %v889
      %v954 = vpack.c.b16 %v892, %v890
      %v955 = vpack.c.b16 %v895, %v893
      %v956 = vpack.c.b16 %v896, %v894
      %v957 = vpack.c.b16 %v899, %v897
      %v958 = vpack.c.b16 %v900, %v898
      %v959 = vpack.c.b16 %v903, %v901
      %v960 = vpack.c.b16 %v904, %v902
      %v961 = vpack.c.b16 %v907, %v905
      %v962 = vpack.c.b16 %v908, %v906
      %v963 = vpack.c.b16 %v911, %v909
      %v964 = vpack.c.b16 %v912, %v910
      %v965 = vpack.c.b16 %v915, %v913
      %v966 = vpack.c.b16 %v916, %v914
      %v967 = vpack.c.b16 %v919, %v917
      %v968 = vpack.c.b16 %v920, %v918
      %v969 = vpack.c.b16 %v923, %v921
      %v970 = vpack.c.b16 %v924, %v922
      %v971 = vpack.c.b16 %v927, %v925
      %v972 = vpack.c.b16 %v928, %v926
      %v973 = vpack.c.b16 %v931, %v929
      %v974 = vpack.c.b16 %v932, %v930
      %v975 = vpack.c.b16 %v935, %v933
      %v976 = vpack.c.b16 %v936, %v934
      %v977 = vpack.c.b16 %v939, %v937
      %v978 = vpack.c.b16 %v940, %v938
      %v979 = vpack.c.b16 %v943, %v941
      %v980 = vpack.c.b16 %v944, %v942
      %v981 = vpack.c.b16 %v947, %v945
      %v982 = vpack.c.b16 %v948, %v946
      %v983 = vpack.c.b16 %v951, %v949
      %v984 = vpack.c.b16 %v952, %v950
      %1017 = vmatpush.bf16.msra.mxu0 %v967
      %1018 = vmatpush.bf16.msra.mxu0 %v965
      %1019 = vmatpush.bf16.msra.mxu0 %v963
      %1020 = vmatpush.bf16.msra.mxu0 %v961
      %1021 = vmatpush.bf16.msra.mxu0 %v959
      %1022 = vmatpush.bf16.msra.mxu0 %v957
      %1023 = vmatpush.bf16.msra.mxu0 %v955
      %1024 = vmatpush.bf16.msra.mxu0 %v953
      %1025 = vmatmul.bf16.gmra.mxu0 %v787
      %v1026 = vpop.f32.mrf.mxu0
      %v1027 = vadd.f32 %v853, %v1026
      %v1028 = vpop.f32.mrf.mxu0
      %v1029 = vadd.f32 %v853, %v1028
      %1030 = vmatmul.bf16.gmra.mxu0 %v789
      %v1031 = vpop.f32.mrf.mxu0
      %v1032 = vadd.f32 %v853, %v1031
      %v1033 = vpop.f32.mrf.mxu0
      %v1034 = vadd.f32 %v853, %v1033
      %1035 = vmatmul.bf16.gmra.mxu0 %v791
      %v1036 = vpop.f32.mrf.mxu0
      %v1037 = vadd.f32 %v853, %v1036
      %v1038 = vpop.f32.mrf.mxu0
      %v1039 = vadd.f32 %v853, %v1038
      %1040 = vmatmul.bf16.gmra.mxu0 %v793
      %v1041 = vpop.f32.mrf.mxu0
      %v1042 = vadd.f32 %v853, %v1041
      %v1043 = vpop.f32.mrf.mxu0
      %v1044 = vadd.f32 %v853, %v1043
      %1045 = vmatmul.bf16.gmra.mxu0 %v795
      %v1046 = vpop.f32.mrf.mxu0
      %v1047 = vadd.f32 %v853, %v1046
      %v1048 = vpop.f32.mrf.mxu0
      %v1049 = vadd.f32 %v853, %v1048
      %1050 = vmatmul.bf16.gmra.mxu0 %v797
      %v1051 = vpop.f32.mrf.mxu0
      %v1052 = vadd.f32 %v853, %v1051
      %v1053 = vpop.f32.mrf.mxu0
      %v1054 = vadd.f32 %v853, %v1053
      %1055 = vmatmul.bf16.gmra.mxu0 %v799
      %v1056 = vpop.f32.mrf.mxu0
      %v1057 = vadd.f32 %v853, %v1056
      %v1058 = vpop.f32.mrf.mxu0
      %v1059 = vadd.f32 %v853, %v1058
      %1060 = vmatmul.bf16.gmra.mxu0 %v801
      %v1061 = vpop.f32.mrf.mxu0
      %v1062 = vadd.f32 %v853, %v1061
      %v1063 = vpop.f32.mrf.mxu0
      %v1064 = vadd.f32 %v853, %v1063
      %1065 = vmatmul.bf16.gmra.mxu0 %v803
      %v1066 = vpop.f32.mrf.mxu0
      %v1067 = vadd.f32 %v853, %v1066
      %v1068 = vpop.f32.mrf.mxu0
      %v1069 = vadd.f32 %v853, %v1068
      %1070 = vmatmul.bf16.gmra.mxu0 %v805
      %v1071 = vpop.f32.mrf.mxu0
      %v1072 = vadd.f32 %v853, %v1071
      %v1073 = vpop.f32.mrf.mxu0
      %v1074 = vadd.f32 %v853, %v1073
      %1075 = vmatmul.bf16.gmra.mxu0 %v807
      %v1076 = vpop.f32.mrf.mxu0
      %v1077 = vadd.f32 %v853, %v1076
      %v1078 = vpop.f32.mrf.mxu0
      %v1079 = vadd.f32 %v853, %v1078
      %1080 = vmatmul.bf16.gmra.mxu0 %v809
      %v1081 = vpop.f32.mrf.mxu0
      %v1082 = vadd.f32 %v853, %v1081
      %v1083 = vpop.f32.mrf.mxu0
      %v1084 = vadd.f32 %v853, %v1083
      %1085 = vmatmul.bf16.gmra.mxu0 %v811
      %v1086 = vpop.f32.mrf.mxu0
      %v1087 = vadd.f32 %v853, %v1086
      %v1088 = vpop.f32.mrf.mxu0
      %v1089 = vadd.f32 %v853, %v1088
      %1090 = vmatmul.bf16.gmra.mxu0 %v813
      %v1091 = vpop.f32.mrf.mxu0
      %v1092 = vadd.f32 %v853, %v1091
      %v1093 = vpop.f32.mrf.mxu0
      %v1094 = vadd.f32 %v853, %v1093
      %1095 = vmatmul.bf16.gmra.mxu0 %v815
      %v1096 = vpop.f32.mrf.mxu0
      %v1097 = vadd.f32 %v853, %v1096
      %v1098 = vpop.f32.mrf.mxu0
      %v1099 = vadd.f32 %v853, %v1098
      %1100 = vmatmul.bf16.gmra.mxu0 %v817
      %v1101 = vpop.f32.mrf.mxu0
      %v1102 = vadd.f32 %v853, %v1101
      %v1103 = vpop.f32.mrf.mxu0
      %v1104 = vadd.f32 %v853, %v1103
      %1105 = vdwg.mxu0
      %1106 = vmatpush.bf16.msra.mxu0 %v983
      %1107 = vmatpush.bf16.msra.mxu0 %v981
      %1108 = vmatpush.bf16.msra.mxu0 %v979
      %1109 = vmatpush.bf16.msra.mxu0 %v977
      %1110 = vmatpush.bf16.msra.mxu0 %v975
      %1111 = vmatpush.bf16.msra.mxu0 %v973
      %1112 = vmatpush.bf16.msra.mxu0 %v971
      %1113 = vmatpush.bf16.msra.mxu0 %v969
      %1114 = vmatmul.bf16.gmra.mxu0 %v788
      %v1115 = vpop.f32.mrf.mxu0
      %v1116 = vadd.f32 %v1027, %v1115
      %v1117 = vpop.f32.mrf.mxu0
      %v1118 = vadd.f32 %v1029, %v1117
      %1119 = vmatmul.bf16.gmra.mxu0 %v790
      %v1120 = vpop.f32.mrf.mxu0
      %v1121 = vadd.f32 %v1032, %v1120
      %v1122 = vpop.f32.mrf.mxu0
      %v1123 = vadd.f32 %v1034, %v1122
      %1124 = vmatmul.bf16.gmra.mxu0 %v792
      %v1125 = vpop.f32.mrf.mxu0
      %v1126 = vadd.f32 %v1037, %v1125
      %v1127 = vpop.f32.mrf.mxu0
      %v1128 = vadd.f32 %v1039, %v1127
      %1129 = vmatmul.bf16.gmra.mxu0 %v794
      %v1130 = vpop.f32.mrf.mxu0
      %v1131 = vadd.f32 %v1042, %v1130
      %v1132 = vpop.f32.mrf.mxu0
      %v1133 = vadd.f32 %v1044, %v1132
      %1134 = vmatmul.bf16.gmra.mxu0 %v796
      %v1135 = vpop.f32.mrf.mxu0
      %v1136 = vadd.f32 %v1047, %v1135
      %v1137 = vpop.f32.mrf.mxu0
      %v1138 = vadd.f32 %v1049, %v1137
      %1139 = vmatmul.bf16.gmra.mxu0 %v798
      %v1140 = vpop.f32.mrf.mxu0
      %v1141 = vadd.f32 %v1052, %v1140
      %v1142 = vpop.f32.mrf.mxu0
      %v1143 = vadd.f32 %v1054, %v1142
      %1144 = vmatmul.bf16.gmra.mxu0 %v800
      %v1145 = vpop.f32.mrf.mxu0
      %v1146 = vadd.f32 %v1057, %v1145
      %v1147 = vpop.f32.mrf.mxu0
      %v1148 = vadd.f32 %v1059, %v1147
      %1149 = vmatmul.bf16.gmra.mxu0 %v802
      %v1150 = vpop.f32.mrf.mxu0
      %v1151 = vadd.f32 %v1062, %v1150
      %v1152 = vpop.f32.mrf.mxu0
      %v1153 = vadd.f32 %v1064, %v1152
      %1154 = vmatmul.bf16.gmra.mxu0 %v804
      %v1155 = vpop.f32.mrf.mxu0
      %v1156 = vadd.f32 %v1067, %v1155
      %v1157 = vpop.f32.mrf.mxu0
      %v1158 = vadd.f32 %v1069, %v1157
      %1159 = vmatmul.bf16.gmra.mxu0 %v806
      %v1160 = vpop.f32.mrf.mxu0
      %v1161 = vadd.f32 %v1072, %v1160
      %v1162 = vpop.f32.mrf.mxu0
      %v1163 = vadd.f32 %v1074, %v1162
      %1164 = vmatmul.bf16.gmra.mxu0 %v808
      %v1165 = vpop.f32.mrf.mxu0
      %v1166 = vadd.f32 %v1077, %v1165
      %v1167 = vpop.f32.mrf.mxu0
      %v1168 = vadd.f32 %v1079, %v1167
      %1169 = vmatmul.bf16.gmra.mxu0 %v810
      %v1170 = vpop.f32.mrf.mxu0
      %v1171 = vadd.f32 %v1082, %v1170
      %v1172 = vpop.f32.mrf.mxu0
      %v1173 = vadd.f32 %v1084, %v1172
      %1174 = vmatmul.bf16.gmra.mxu0 %v812
      %v1175 = vpop.f32.mrf.mxu0
      %v1176 = vadd.f32 %v1087, %v1175
      %v1177 = vpop.f32.mrf.mxu0
      %v1178 = vadd.f32 %v1089, %v1177
      %1179 = vmatmul.bf16.gmra.mxu0 %v814
      %v1180 = vpop.f32.mrf.mxu0
      %v1181 = vadd.f32 %v1092, %v1180
      %v1182 = vpop.f32.mrf.mxu0
      %v1183 = vadd.f32 %v1094, %v1182
      %1184 = vmatmul.bf16.gmra.mxu0 %v816
      %v1185 = vpop.f32.mrf.mxu0
      %v1186 = vadd.f32 %v1097, %v1185
      %v1187 = vpop.f32.mrf.mxu0
      %v1188 = vadd.f32 %v1099, %v1187
      %1189 = vmatmul.bf16.gmra.mxu0 %v818
      %v1190 = vpop.f32.mrf.mxu0
      %v1191 = vadd.f32 %v1102, %v1190
      %v1192 = vpop.f32.mrf.mxu0
      %v1193 = vadd.f32 %v1104, %v1192
      %1194 = vdwg.mxu0
      %1195 = vmatpush.bf16.msra.mxu0 %v968
      %1196 = vmatpush.bf16.msra.mxu0 %v966
      %1197 = vmatpush.bf16.msra.mxu0 %v964
      %1198 = vmatpush.bf16.msra.mxu0 %v962
      %1199 = vmatpush.bf16.msra.mxu0 %v960
      %1200 = vmatpush.bf16.msra.mxu0 %v958
      %1201 = vmatpush.bf16.msra.mxu0 %v956
      %1202 = vmatpush.bf16.msra.mxu0 %v954
      %1203 = vmatmul.bf16.gmra.mxu0 %v787
      %v1204 = vpop.f32.mrf.mxu0
      %v1205 = vadd.f32 %v854, %v1204
      %v1206 = vpop.f32.mrf.mxu0
      %v1207 = vadd.f32 %v854, %v1206
      %1208 = vmatmul.bf16.gmra.mxu0 %v789
      %v1209 = vpop.f32.mrf.mxu0
      %v1210 = vadd.f32 %v854, %v1209
      %v1211 = vpop.f32.mrf.mxu0
      %v1212 = vadd.f32 %v854, %v1211
      %1213 = vmatmul.bf16.gmra.mxu0 %v791
      %v1214 = vpop.f32.mrf.mxu0
      %v1215 = vadd.f32 %v854, %v1214
      %v1216 = vpop.f32.mrf.mxu0
      %v1217 = vadd.f32 %v854, %v1216
      %1218 = vmatmul.bf16.gmra.mxu0 %v793
      %v1219 = vpop.f32.mrf.mxu0
      %v1220 = vadd.f32 %v854, %v1219
      %v1221 = vpop.f32.mrf.mxu0
      %v1222 = vadd.f32 %v854, %v1221
      %1223 = vmatmul.bf16.gmra.mxu0 %v795
      %v1224 = vpop.f32.mrf.mxu0
      %v1225 = vadd.f32 %v854, %v1224
      %v1226 = vpop.f32.mrf.mxu0
      %v1227 = vadd.f32 %v854, %v1226
      %1228 = vmatmul.bf16.gmra.mxu0 %v797
      %v1229 = vpop.f32.mrf.mxu0
      %v1230 = vadd.f32 %v854, %v1229
      %v1231 = vpop.f32.mrf.mxu0
      %v1232 = vadd.f32 %v854, %v1231
      %1233 = vmatmul.bf16.gmra.mxu0 %v799
      %v1234 = vpop.f32.mrf.mxu0
      %v1235 = vadd.f32 %v854, %v1234
      %v1236 = vpop.f32.mrf.mxu0
      %v1237 = vadd.f32 %v854, %v1236
      %1238 = vmatmul.bf16.gmra.mxu0 %v801
      %v1239 = vpop.f32.mrf.mxu0
      %v1240 = vadd.f32 %v854, %v1239
      %v1241 = vpop.f32.mrf.mxu0
      %v1242 = vadd.f32 %v854, %v1241
      %1243 = vmatmul.bf16.gmra.mxu0 %v803
      %v1244 = vpop.f32.mrf.mxu0
      %v1245 = vadd.f32 %v854, %v1244
      %v1246 = vpop.f32.mrf.mxu0
      %v1247 = vadd.f32 %v854, %v1246
      %1248 = vmatmul.bf16.gmra.mxu0 %v805
      %v1249 = vpop.f32.mrf.mxu0
      %v1250 = vadd.f32 %v854, %v1249
      %v1251 = vpop.f32.mrf.mxu0
      %v1252 = vadd.f32 %v854, %v1251
      %1253 = vmatmul.bf16.gmra.mxu0 %v807
      %v1254 = vpop.f32.mrf.mxu0
      %v1255 = vadd.f32 %v854, %v1254
      %v1256 = vpop.f32.mrf.mxu0
      %v1257 = vadd.f32 %v854, %v1256
      %1258 = vmatmul.bf16.gmra.mxu0 %v809
      %v1259 = vpop.f32.mrf.mxu0
      %v1260 = vadd.f32 %v854, %v1259
      %v1261 = vpop.f32.mrf.mxu0
      %v1262 = vadd.f32 %v854, %v1261
      %1263 = vmatmul.bf16.gmra.mxu0 %v811
      %v1264 = vpop.f32.mrf.mxu0
      %v1265 = vadd.f32 %v854, %v1264
      %v1266 = vpop.f32.mrf.mxu0
      %v1267 = vadd.f32 %v854, %v1266
      %1268 = vmatmul.bf16.gmra.mxu0 %v813
      %v1269 = vpop.f32.mrf.mxu0
      %v1270 = vadd.f32 %v854, %v1269
      %v1271 = vpop.f32.mrf.mxu0
      %v1272 = vadd.f32 %v854, %v1271
      %1273 = vmatmul.bf16.gmra.mxu0 %v815
      %v1274 = vpop.f32.mrf.mxu0
      %v1275 = vadd.f32 %v854, %v1274
      %v1276 = vpop.f32.mrf.mxu0
      %v1277 = vadd.f32 %v854, %v1276
      %1278 = vmatmul.bf16.gmra.mxu0 %v817
      %v1279 = vpop.f32.mrf.mxu0
      %v1280 = vadd.f32 %v854, %v1279
      %v1281 = vpop.f32.mrf.mxu0
      %v1282 = vadd.f32 %v854, %v1281
      %1283 = vdwg.mxu0
      %1284 = vmatpush.bf16.msra.mxu0 %v984
      %1285 = vmatpush.bf16.msra.mxu0 %v982
      %1286 = vmatpush.bf16.msra.mxu0 %v980
      %1287 = vmatpush.bf16.msra.mxu0 %v978
      %1288 = vmatpush.bf16.msra.mxu0 %v976
      %1289 = vmatpush.bf16.msra.mxu0 %v974
      %1290 = vmatpush.bf16.msra.mxu0 %v972
      %1291 = vmatpush.bf16.msra.mxu0 %v970
      %1292 = vmatmul.bf16.gmra.mxu0 %v788
      %v1293 = vpop.f32.mrf.mxu0
      %v1294 = vadd.f32 %v1205, %v1293
      %v1295 = vpop.f32.mrf.mxu0
      %v1296 = vadd.f32 %v1207, %v1295
      %1297 = vmatmul.bf16.gmra.mxu0 %v790
      %v1298 = vpop.f32.mrf.mxu0
      %v1299 = vadd.f32 %v1210, %v1298
      %v1300 = vpop.f32.mrf.mxu0
      %v1301 = vadd.f32 %v1212, %v1300
      %1302 = vmatmul.bf16.gmra.mxu0 %v792
      %v1303 = vpop.f32.mrf.mxu0
      %v1304 = vadd.f32 %v1215, %v1303
      %v1305 = vpop.f32.mrf.mxu0
      %v1306 = vadd.f32 %v1217, %v1305
      %1307 = vmatmul.bf16.gmra.mxu0 %v794
      %v1308 = vpop.f32.mrf.mxu0
      %v1309 = vadd.f32 %v1220, %v1308
      %v1310 = vpop.f32.mrf.mxu0
      %v1311 = vadd.f32 %v1222, %v1310
      %1312 = vmatmul.bf16.gmra.mxu0 %v796
      %v1313 = vpop.f32.mrf.mxu0
      %v1314 = vadd.f32 %v1225, %v1313
      %v1315 = vpop.f32.mrf.mxu0
      %v1316 = vadd.f32 %v1227, %v1315
      %1317 = vmatmul.bf16.gmra.mxu0 %v798
      %v1318 = vpop.f32.mrf.mxu0
      %v1319 = vadd.f32 %v1230, %v1318
      %v1320 = vpop.f32.mrf.mxu0
      %v1321 = vadd.f32 %v1232, %v1320
      %1322 = vmatmul.bf16.gmra.mxu0 %v800
      %v1323 = vpop.f32.mrf.mxu0
      %v1324 = vadd.f32 %v1235, %v1323
      %v1325 = vpop.f32.mrf.mxu0
      %v1326 = vadd.f32 %v1237, %v1325
      %1327 = vmatmul.bf16.gmra.mxu0 %v802
      %v1328 = vpop.f32.mrf.mxu0
      %v1329 = vadd.f32 %v1240, %v1328
      %v1330 = vpop.f32.mrf.mxu0
      %v1331 = vadd.f32 %v1242, %v1330
      %1332 = vmatmul.bf16.gmra.mxu0 %v804
      %v1333 = vpop.f32.mrf.mxu0
      %v1334 = vadd.f32 %v1245, %v1333
      %v1335 = vpop.f32.mrf.mxu0
      %v1336 = vadd.f32 %v1247, %v1335
      %1337 = vmatmul.bf16.gmra.mxu0 %v806
      %v1338 = vpop.f32.mrf.mxu0
      %v1339 = vadd.f32 %v1250, %v1338
      %v1340 = vpop.f32.mrf.mxu0
      %v1341 = vadd.f32 %v1252, %v1340
      %1342 = vmatmul.bf16.gmra.mxu0 %v808
      %v1343 = vpop.f32.mrf.mxu0
      %v1344 = vadd.f32 %v1255, %v1343
      %v1345 = vpop.f32.mrf.mxu0
      %v1346 = vadd.f32 %v1257, %v1345
      %1347 = vmatmul.bf16.gmra.mxu0 %v810
      %v1348 = vpop.f32.mrf.mxu0
      %v1349 = vadd.f32 %v1260, %v1348
      %v1350 = vpop.f32.mrf.mxu0
      %v1351 = vadd.f32 %v1262, %v1350
      %1352 = vmatmul.bf16.gmra.mxu0 %v812
      %v1353 = vpop.f32.mrf.mxu0
      %v1354 = vadd.f32 %v1265, %v1353
      %v1355 = vpop.f32.mrf.mxu0
      %v1356 = vadd.f32 %v1267, %v1355
      %1357 = vmatmul.bf16.gmra.mxu0 %v814
      %v1358 = vpop.f32.mrf.mxu0
      %v1359 = vadd.f32 %v1270, %v1358
      %v1360 = vpop.f32.mrf.mxu0
      %v1361 = vadd.f32 %v1272, %v1360
      %1362 = vmatmul.bf16.gmra.mxu0 %v816
      %v1363 = vpop.f32.mrf.mxu0
      %v1364 = vadd.f32 %v1275, %v1363
      %v1365 = vpop.f32.mrf.mxu0
      %v1366 = vadd.f32 %v1277, %v1365
      %1367 = vmatmul.bf16.gmra.mxu0 %v818
      %v1368 = vpop.f32.mrf.mxu0
      %v1369 = vadd.f32 %v1280, %v1368
      %v1370 = vpop.f32.mrf.mxu0
      %v1371 = vadd.f32 %v1282, %v1370
      %1372 = vdwg.mxu0
      %v1373 = vmax.f32 %v1116, 0.0
      %v1374 = vmax.f32 %v1294, 0.0
      %v1375 = vmax.f32 %v1118, 0.0
      %v1376 = vmax.f32 %v1296, 0.0
      %v1377 = vmax.f32 %v1121, 0.0
      %v1378 = vmax.f32 %v1299, 0.0
      %v1379 = vmax.f32 %v1123, 0.0
      %v1380 = vmax.f32 %v1301, 0.0
      %v1381 = vmax.f32 %v1126, 0.0
      %v1382 = vmax.f32 %v1304, 0.0
      %v1383 = vmax.f32 %v1128, 0.0
      %v1384 = vmax.f32 %v1306, 0.0
      %v1385 = vmax.f32 %v1131, 0.0
      %v1386 = vmax.f32 %v1309, 0.0
      %v1387 = vmax.f32 %v1133, 0.0
      %v1388 = vmax.f32 %v1311, 0.0
      %v1389 = vmax.f32 %v1136, 0.0
      %v1390 = vmax.f32 %v1314, 0.0
      %v1391 = vmax.f32 %v1138, 0.0
      %v1392 = vmax.f32 %v1316, 0.0
      %v1393 = vmax.f32 %v1141, 0.0
      %v1394 = vmax.f32 %v1319, 0.0
      %v1395 = vmax.f32 %v1143, 0.0
      %v1396 = vmax.f32 %v1321, 0.0
      %v1397 = vmax.f32 %v1146, 0.0
      %v1398 = vmax.f32 %v1324, 0.0
      %v1399 = vmax.f32 %v1148, 0.0
      %v1400 = vmax.f32 %v1326, 0.0
      %v1401 = vmax.f32 %v1151, 0.0
      %v1402 = vmax.f32 %v1329, 0.0
      %v1403 = vmax.f32 %v1153, 0.0
      %v1404 = vmax.f32 %v1331, 0.0
      %v1405 = vmax.f32 %v1156, 0.0
      %v1406 = vmax.f32 %v1334, 0.0
      %v1407 = vmax.f32 %v1158, 0.0
      %v1408 = vmax.f32 %v1336, 0.0
      %v1409 = vmax.f32 %v1161, 0.0
      %v1410 = vmax.f32 %v1339, 0.0
      %v1411 = vmax.f32 %v1163, 0.0
      %v1412 = vmax.f32 %v1341, 0.0
      %v1413 = vmax.f32 %v1166, 0.0
      %v1414 = vmax.f32 %v1344, 0.0
      %v1415 = vmax.f32 %v1168, 0.0
      %v1416 = vmax.f32 %v1346, 0.0
      %v1417 = vmax.f32 %v1171, 0.0
      %v1418 = vmax.f32 %v1349, 0.0
      %v1419 = vmax.f32 %v1173, 0.0
      %v1420 = vmax.f32 %v1351, 0.0
      %v1421 = vmax.f32 %v1176, 0.0
      %v1422 = vmax.f32 %v1354, 0.0
      %v1423 = vmax.f32 %v1178, 0.0
      %v1424 = vmax.f32 %v1356, 0.0
      %v1425 = vmax.f32 %v1181, 0.0
      %v1426 = vmax.f32 %v1359, 0.0
      %v1427 = vmax.f32 %v1183, 0.0
      %v1428 = vmax.f32 %v1361, 0.0
      %v1429 = vmax.f32 %v1186, 0.0
      %v1430 = vmax.f32 %v1364, 0.0
      %v1431 = vmax.f32 %v1188, 0.0
      %v1432 = vmax.f32 %v1366, 0.0
      %v1433 = vmax.f32 %v1191, 0.0
      %v1434 = vmax.f32 %v1369, 0.0
      %v1435 = vmax.f32 %v1193, 0.0
      %v1436 = vmax.f32 %v1371, 0.0
      %v1437 = vpack.c.bf16 %v1375, %v1373
      %v1438 = vpack.c.bf16 %v1376, %v1374
      %v1439 = vpack.c.bf16 %v1379, %v1377
      %v1440 = vpack.c.bf16 %v1380, %v1378
      %v1441 = vpack.c.bf16 %v1383, %v1381
      %v1442 = vpack.c.bf16 %v1384, %v1382
      %v1443 = vpack.c.bf16 %v1387, %v1385
      %v1444 = vpack.c.bf16 %v1388, %v1386
      %v1445 = vpack.c.bf16 %v1391, %v1389
      %v1446 = vpack.c.bf16 %v1392, %v1390
      %v1447 = vpack.c.bf16 %v1395, %v1393
      %v1448 = vpack.c.bf16 %v1396, %v1394
      %v1449 = vpack.c.bf16 %v1399, %v1397
      %v1450 = vpack.c.bf16 %v1400, %v1398
      %v1451 = vpack.c.bf16 %v1403, %v1401
      %v1452 = vpack.c.bf16 %v1404, %v1402
      %v1453 = vpack.c.bf16 %v1407, %v1405
      %v1454 = vpack.c.bf16 %v1408, %v1406
      %v1455 = vpack.c.bf16 %v1411, %v1409
      %v1456 = vpack.c.bf16 %v1412, %v1410
      %v1457 = vpack.c.bf16 %v1415, %v1413
      %v1458 = vpack.c.bf16 %v1416, %v1414
      %v1459 = vpack.c.bf16 %v1419, %v1417
      %v1460 = vpack.c.bf16 %v1420, %v1418
      %v1461 = vpack.c.bf16 %v1423, %v1421
      %v1462 = vpack.c.bf16 %v1424, %v1422
      %v1463 = vpack.c.bf16 %v1427, %v1425
      %v1464 = vpack.c.bf16 %v1428, %v1426
      %v1465 = vpack.c.bf16 %v1431, %v1429
      %v1466 = vpack.c.bf16 %v1432, %v1430
      %v1467 = vpack.c.bf16 %v1435, %v1433
      %v1468 = vpack.c.bf16 %v1436, %v1434
      %v1469 = vld [vmem:[%s5] sm:$0xff]
      %v1470 = vld [vmem:[%s5 + $0x8] sm:$0xff]
      %v1471 = vld [vmem:[%s5 + $0x10] sm:$0xff]
      %v1472 = vld [vmem:[%s5 + $0x18] sm:$0xff]
      %v1473 = vld [vmem:[%s5 + $0x20] sm:$0xff]
      %v1474 = vld [vmem:[%s5 + $0x28] sm:$0xff]
      %v1475 = vld [vmem:[%s5 + $0x30] sm:$0xff]
      %v1476 = vld [vmem:[%s5 + $0x38] sm:$0xff]
      %v1477 = vld [vmem:[%s5 + $0x40] sm:$0xff]
      %v1478 = vld [vmem:[%s5 + $0x48] sm:$0xff]
      %v1479 = vld [vmem:[%s5 + $0x50] sm:$0xff]
      %v1480 = vld [vmem:[%s5 + $0x58] sm:$0xff]
      %v1481 = vld [vmem:[%s5 + $0x60] sm:$0xff]
      %v1482 = vld [vmem:[%s5 + $0x68] sm:$0xff]
      %v1483 = vld [vmem:[%s5 + $0x70] sm:$0xff]
      %v1484 = vld [vmem:[%s5 + $0x78] sm:$0xff]
      %v1485 = vld [vmem:[%s5 + $0x80] sm:$0xff]
      %v1486 = vld [vmem:[%s5 + $0x88] sm:$0xff]
      %v1487 = vld [vmem:[%s5 + $0x90] sm:$0xff]
      %v1488 = vld [vmem:[%s5 + $0x98] sm:$0xff]
      %v1489 = vld [vmem:[%s5 + $0xa0] sm:$0xff]
      %v1490 = vld [vmem:[%s5 + $0xa8] sm:$0xff]
      %v1491 = vld [vmem:[%s5 + $0xb0] sm:$0xff]
      %v1492 = vld [vmem:[%s5 + $0xb8] sm:$0xff]
      %v1493 = vld [vmem:[%s5 + $0xc0] sm:$0xff]
      %v1494 = vld [vmem:[%s5 + $0xc8] sm:$0xff]
      %v1495 = vld [vmem:[%s5 + $0xd0] sm:$0xff]
      %v1496 = vld [vmem:[%s5 + $0xd8] sm:$0xff]
      %v1497 = vld [vmem:[%s5 + $0xe0] sm:$0xff]
      %v1498 = vld [vmem:[%s5 + $0xe8] sm:$0xff]
      %v1499 = vld [vmem:[%s5 + $0xf0] sm:$0xff]
      %v1500 = vld [vmem:[%s5 + $0xf8] sm:$0xff]
      %v1501 = vld [vmem:[%s6] sm:$0x3]
      %v1503 = vperm.slane %v1501, 0
      %v1504 = vperm.slane %v1501, 1
      %v1539 = vunpack.c.l.b16 %v1469
      %v1540 = vunpack.c.h.b16 %v1469
      %v1541 = vunpack.c.l.b16 %v1470
      %v1542 = vunpack.c.h.b16 %v1470
      %v1543 = vunpack.c.l.b16 %v1471
      %v1544 = vunpack.c.h.b16 %v1471
      %v1545 = vunpack.c.l.b16 %v1472
      %v1546 = vunpack.c.h.b16 %v1472
      %v1547 = vunpack.c.l.b16 %v1473
      %v1548 = vunpack.c.h.b16 %v1473
      %v1549 = vunpack.c.l.b16 %v1474
      %v1550 = vunpack.c.h.b16 %v1474
      %v1551 = vunpack.c.l.b16 %v1475
      %v1552 = vunpack.c.h.b16 %v1475
      %v1553 = vunpack.c.l.b16 %v1476
      %v1554 = vunpack.c.h.b16 %v1476
      %v1555 = vunpack.c.l.b16 %v1477
      %v1556 = vunpack.c.h.b16 %v1477
      %v1557 = vunpack.c.l.b16 %v1478
      %v1558 = vunpack.c.h.b16 %v1478
      %v1559 = vunpack.c.l.b16 %v1479
      %v1560 = vunpack.c.h.b16 %v1479
      %v1561 = vunpack.c.l.b16 %v1480
      %v1562 = vunpack.c.h.b16 %v1480
      %v1563 = vunpack.c.l.b16 %v1481
      %v1564 = vunpack.c.h.b16 %v1481
      %v1565 = vunpack.c.l.b16 %v1482
      %v1566 = vunpack.c.h.b16 %v1482
      %v1567 = vunpack.c.l.b16 %v1483
      %v1568 = vunpack.c.h.b16 %v1483
      %v1569 = vunpack.c.l.b16 %v1484
      %v1570 = vunpack.c.h.b16 %v1484
      %v1571 = vunpack.c.l.b16 %v1485
      %v1572 = vunpack.c.h.b16 %v1485
      %v1573 = vunpack.c.l.b16 %v1486
      %v1574 = vunpack.c.h.b16 %v1486
      %v1575 = vunpack.c.l.b16 %v1487
      %v1576 = vunpack.c.h.b16 %v1487
      %v1577 = vunpack.c.l.b16 %v1488
      %v1578 = vunpack.c.h.b16 %v1488
      %v1579 = vunpack.c.l.b16 %v1489
      %v1580 = vunpack.c.h.b16 %v1489
      %v1581 = vunpack.c.l.b16 %v1490
      %v1582 = vunpack.c.h.b16 %v1490
      %v1583 = vunpack.c.l.b16 %v1491
      %v1584 = vunpack.c.h.b16 %v1491
      %v1585 = vunpack.c.l.b16 %v1492
      %v1586 = vunpack.c.h.b16 %v1492
      %v1587 = vunpack.c.l.b16 %v1493
      %v1588 = vunpack.c.h.b16 %v1493
      %v1589 = vunpack.c.l.b16 %v1494
      %v1590 = vunpack.c.h.b16 %v1494
      %v1591 = vunpack.c.l.b16 %v1495
      %v1592 = vunpack.c.h.b16 %v1495
      %v1593 = vunpack.c.l.b16 %v1496
      %v1594 = vunpack.c.h.b16 %v1496
      %v1595 = vunpack.c.l.b16 %v1497
      %v1596 = vunpack.c.h.b16 %v1497
      %v1597 = vunpack.c.l.b16 %v1498
      %v1598 = vunpack.c.h.b16 %v1498
      %v1599 = vunpack.c.l.b16 %v1499
      %v1600 = vunpack.c.h.b16 %v1499
      %v1601 = vunpack.c.l.b16 %v1500
      %v1602 = vunpack.c.h.b16 %v1500
      %v1603 = vpack.c.b16 %v1541, %v1539
      %v1604 = vpack.c.b16 %v1542, %v1540
      %v1605 = vpack.c.b16 %v1545, %v1543
      %v1606 = vpack.c.b16 %v1546, %v1544
      %v1607 = vpack.c.b16 %v1549, %v1547
      %v1608 = vpack.c.b16 %v1550, %v1548
      %v1609 = vpack.c.b16 %v1553, %v1551
      %v1610 = vpack.c.b16 %v1554, %v1552
      %v1611 = vpack.c.b16 %v1557, %v1555
      %v1612 = vpack.c.b16 %v1558, %v1556
      %v1613 = vpack.c.b16 %v1561, %v1559
      %v1614 = vpack.c.b16 %v1562, %v1560
      %v1615 = vpack.c.b16 %v1565, %v1563
      %v1616 = vpack.c.b16 %v1566, %v1564
      %v1617 = vpack.c.b16 %v1569, %v1567
      %v1618 = vpack.c.b16 %v1570, %v1568
      %v1619 = vpack.c.b16 %v1573, %v1571
      %v1620 = vpack.c.b16 %v1574, %v1572
      %v1621 = vpack.c.b16 %v1577, %v1575
      %v1622 = vpack.c.b16 %v1578, %v1576
      %v1623 = vpack.c.b16 %v1581, %v1579
      %v1624 = vpack.c.b16 %v1582, %v1580
      %v1625 = vpack.c.b16 %v1585, %v1583
      %v1626 = vpack.c.b16 %v1586, %v1584
      %v1627 = vpack.c.b16 %v1589, %v1587
      %v1628 = vpack.c.b16 %v1590, %v1588
      %v1629 = vpack.c.b16 %v1593, %v1591
      %v1630 = vpack.c.b16 %v1594, %v1592
      %v1631 = vpack.c.b16 %v1597, %v1595
      %v1632 = vpack.c.b16 %v1598, %v1596
      %v1633 = vpack.c.b16 %v1601, %v1599
      %v1634 = vpack.c.b16 %v1602, %v1600
      %1667 = vmatpush.bf16.msra.mxu0 %v1617
      %1668 = vmatpush.bf16.msra.mxu0 %v1615
      %1669 = vmatpush.bf16.msra.mxu0 %v1613
      %1670 = vmatpush.bf16.msra.mxu0 %v1611
      %1671 = vmatpush.bf16.msra.mxu0 %v1609
      %1672 = vmatpush.bf16.msra.mxu0 %v1607
      %1673 = vmatpush.bf16.msra.mxu0 %v1605
      %1674 = vmatpush.bf16.msra.mxu0 %v1603
      %1675 = vmatmul.bf16.gmra.mxu0 %v1437
      %v1676 = vpop.f32.mrf.mxu0
      %v1677 = vadd.f32 %v1503, %v1676
      %v1678 = vpop.f32.mrf.mxu0
      %v1679 = vadd.f32 %v1503, %v1678
      %1680 = vmatmul.bf16.gmra.mxu0 %v1439
      %v1681 = vpop.f32.mrf.mxu0
      %v1682 = vadd.f32 %v1503, %v1681
      %v1683 = vpop.f32.mrf.mxu0
      %v1684 = vadd.f32 %v1503, %v1683
      %1685 = vmatmul.bf16.gmra.mxu0 %v1441
      %v1686 = vpop.f32.mrf.mxu0
      %v1687 = vadd.f32 %v1503, %v1686
      %v1688 = vpop.f32.mrf.mxu0
      %v1689 = vadd.f32 %v1503, %v1688
      %1690 = vmatmul.bf16.gmra.mxu0 %v1443
      %v1691 = vpop.f32.mrf.mxu0
      %v1692 = vadd.f32 %v1503, %v1691
      %v1693 = vpop.f32.mrf.mxu0
      %v1694 = vadd.f32 %v1503, %v1693
      %1695 = vmatmul.bf16.gmra.mxu0 %v1445
      %v1696 = vpop.f32.mrf.mxu0
      %v1697 = vadd.f32 %v1503, %v1696
      %v1698 = vpop.f32.mrf.mxu0
      %v1699 = vadd.f32 %v1503, %v1698
      %1700 = vmatmul.bf16.gmra.mxu0 %v1447
      %v1701 = vpop.f32.mrf.mxu0
      %v1702 = vadd.f32 %v1503, %v1701
      %v1703 = vpop.f32.mrf.mxu0
      %v1704 = vadd.f32 %v1503, %v1703
      %1705 = vmatmul.bf16.gmra.mxu0 %v1449
      %v1706 = vpop.f32.mrf.mxu0
      %v1707 = vadd.f32 %v1503, %v1706
      %v1708 = vpop.f32.mrf.mxu0
      %v1709 = vadd.f32 %v1503, %v1708
      %1710 = vmatmul.bf16.gmra.mxu0 %v1451
      %v1711 = vpop.f32.mrf.mxu0
      %v1712 = vadd.f32 %v1503, %v1711
      %v1713 = vpop.f32.mrf.mxu0
      %v1714 = vadd.f32 %v1503, %v1713
      %1715 = vmatmul.bf16.gmra.mxu0 %v1453
      %v1716 = vpop.f32.mrf.mxu0
      %v1717 = vadd.f32 %v1503, %v1716
      %v1718 = vpop.f32.mrf.mxu0
      %v1719 = vadd.f32 %v1503, %v1718
      %1720 = vmatmul.bf16.gmra.mxu0 %v1455
      %v1721 = vpop.f32.mrf.mxu0
      %v1722 = vadd.f32 %v1503, %v1721
      %v1723 = vpop.f32.mrf.mxu0
      %v1724 = vadd.f32 %v1503, %v1723
      %1725 = vmatmul.bf16.gmra.mxu0 %v1457
      %v1726 = vpop.f32.mrf.mxu0
      %v1727 = vadd.f32 %v1503, %v1726
      %v1728 = vpop.f32.mrf.mxu0
      %v1729 = vadd.f32 %v1503, %v1728
      %1730 = vmatmul.bf16.gmra.mxu0 %v1459
      %v1731 = vpop.f32.mrf.mxu0
      %v1732 = vadd.f32 %v1503, %v1731
      %v1733 = vpop.f32.mrf.mxu0
      %v1734 = vadd.f32 %v1503, %v1733
      %1735 = vmatmul.bf16.gmra.mxu0 %v1461
      %v1736 = vpop.f32.mrf.mxu0
      %v1737 = vadd.f32 %v1503, %v1736
      %v1738 = vpop.f32.mrf.mxu0
      %v1739 = vadd.f32 %v1503, %v1738
      %1740 = vmatmul.bf16.gmra.mxu0 %v1463
      %v1741 = vpop.f32.mrf.mxu0
      %v1742 = vadd.f32 %v1503, %v1741
      %v1743 = vpop.f32.mrf.mxu0
      %v1744 = vadd.f32 %v1503, %v1743
      %1745 = vmatmul.bf16.gmra.mxu0 %v1465
      %v1746 = vpop.f32.mrf.mxu0
      %v1747 = vadd.f32 %v1503, %v1746
      %v1748 = vpop.f32.mrf.mxu0
      %v1749 = vadd.f32 %v1503, %v1748
      %1750 = vmatmul.bf16.gmra.mxu0 %v1467
      %v1751 = vpop.f32.mrf.mxu0
      %v1752 = vadd.f32 %v1503, %v1751
      %v1753 = vpop.f32.mrf.mxu0
      %v1754 = vadd.f32 %v1503, %v1753
      %1755 = vdwg.mxu0
      %1756 = vmatpush.bf16.msra.mxu0 %v1633
      %1757 = vmatpush.bf16.msra.mxu0 %v1631
      %1758 = vmatpush.bf16.msra.mxu0 %v1629
      %1759 = vmatpush.bf16.msra.mxu0 %v1627
      %1760 = vmatpush.bf16.msra.mxu0 %v1625
      %1761 = vmatpush.bf16.msra.mxu0 %v1623
      %1762 = vmatpush.bf16.msra.mxu0 %v1621
      %1763 = vmatpush.bf16.msra.mxu0 %v1619
      %1764 = vmatmul.bf16.gmra.mxu0 %v1438
      %v1765 = vpop.f32.mrf.mxu0
      %v1766 = vadd.f32 %v1677, %v1765
      %v1767 = vpop.f32.mrf.mxu0
      %v1768 = vadd.f32 %v1679, %v1767
      %1769 = vmatmul.bf16.gmra.mxu0 %v1440
      %v1770 = vpop.f32.mrf.mxu0
      %v1771 = vadd.f32 %v1682, %v1770
      %v1772 = vpop.f32.mrf.mxu0
      %v1773 = vadd.f32 %v1684, %v1772
      %1774 = vmatmul.bf16.gmra.mxu0 %v1442
      %v1775 = vpop.f32.mrf.mxu0
      %v1776 = vadd.f32 %v1687, %v1775
      %v1777 = vpop.f32.mrf.mxu0
      %v1778 = vadd.f32 %v1689, %v1777
      %1779 = vmatmul.bf16.gmra.mxu0 %v1444
      %v1780 = vpop.f32.mrf.mxu0
      %v1781 = vadd.f32 %v1692, %v1780
      %v1782 = vpop.f32.mrf.mxu0
      %v1783 = vadd.f32 %v1694, %v1782
      %1784 = vmatmul.bf16.gmra.mxu0 %v1446
      %v1785 = vpop.f32.mrf.mxu0
      %v1786 = vadd.f32 %v1697, %v1785
      %v1787 = vpop.f32.mrf.mxu0
      %v1788 = vadd.f32 %v1699, %v1787
      %1789 = vmatmul.bf16.gmra.mxu0 %v1448
      %v1790 = vpop.f32.mrf.mxu0
      %v1791 = vadd.f32 %v1702, %v1790
      %v1792 = vpop.f32.mrf.mxu0
      %v1793 = vadd.f32 %v1704, %v1792
      %1794 = vmatmul.bf16.gmra.mxu0 %v1450
      %v1795 = vpop.f32.mrf.mxu0
      %v1796 = vadd.f32 %v1707, %v1795
      %v1797 = vpop.f32.mrf.mxu0
      %v1798 = vadd.f32 %v1709, %v1797
      %1799 = vmatmul.bf16.gmra.mxu0 %v1452
      %v1800 = vpop.f32.mrf.mxu0
      %v1801 = vadd.f32 %v1712, %v1800
      %v1802 = vpop.f32.mrf.mxu0
      %v1803 = vadd.f32 %v1714, %v1802
      %1804 = vmatmul.bf16.gmra.mxu0 %v1454
      %v1805 = vpop.f32.mrf.mxu0
      %v1806 = vadd.f32 %v1717, %v1805
      %v1807 = vpop.f32.mrf.mxu0
      %v1808 = vadd.f32 %v1719, %v1807
      %1809 = vmatmul.bf16.gmra.mxu0 %v1456
      %v1810 = vpop.f32.mrf.mxu0
      %v1811 = vadd.f32 %v1722, %v1810
      %v1812 = vpop.f32.mrf.mxu0
      %v1813 = vadd.f32 %v1724, %v1812
      %1814 = vmatmul.bf16.gmra.mxu0 %v1458
      %v1815 = vpop.f32.mrf.mxu0
      %v1816 = vadd.f32 %v1727, %v1815
      %v1817 = vpop.f32.mrf.mxu0
      %v1818 = vadd.f32 %v1729, %v1817
      %1819 = vmatmul.bf16.gmra.mxu0 %v1460
      %v1820 = vpop.f32.mrf.mxu0
      %v1821 = vadd.f32 %v1732, %v1820
      %v1822 = vpop.f32.mrf.mxu0
      %v1823 = vadd.f32 %v1734, %v1822
      %1824 = vmatmul.bf16.gmra.mxu0 %v1462
      %v1825 = vpop.f32.mrf.mxu0
      %v1826 = vadd.f32 %v1737, %v1825
      %v1827 = vpop.f32.mrf.mxu0
      %v1828 = vadd.f32 %v1739, %v1827
      %1829 = vmatmul.bf16.gmra.mxu0 %v1464
      %v1830 = vpop.f32.mrf.mxu0
      %v1831 = vadd.f32 %v1742, %v1830
      %v1832 = vpop.f32.mrf.mxu0
      %v1833 = vadd.f32 %v1744, %v1832
      %1834 = vmatmul.bf16.gmra.mxu0 %v1466
      %v1835 = vpop.f32.mrf.mxu0
      %v1836 = vadd.f32 %v1747, %v1835
      %v1837 = vpop.f32.mrf.mxu0
      %v1838 = vadd.f32 %v1749, %v1837
      %1839 = vmatmul.bf16.gmra.mxu0 %v1468
      %v1840 = vpop.f32.mrf.mxu0
      %v1841 = vadd.f32 %v1752, %v1840
      %v1842 = vpop.f32.mrf.mxu0
      %v1843 = vadd.f32 %v1754, %v1842
      %1844 = vdwg.mxu0
      %1845 = vmatpush.bf16.msra.mxu0 %v1618
      %1846 = vmatpush.bf16.msra.mxu0 %v1616
      %1847 = vmatpush.bf16.msra.mxu0 %v1614
      %1848 = vmatpush.bf16.msra.mxu0 %v1612
      %1849 = vmatpush.bf16.msra.mxu0 %v1610
      %1850 = vmatpush.bf16.msra.mxu0 %v1608
      %1851 = vmatpush.bf16.msra.mxu0 %v1606
      %1852 = vmatpush.bf16.msra.mxu0 %v1604
      %1853 = vmatmul.bf16.gmra.mxu0 %v1437
      %v1854 = vpop.f32.mrf.mxu0
      %v1855 = vadd.f32 %v1504, %v1854
      %v1856 = vpop.f32.mrf.mxu0
      %v1857 = vadd.f32 %v1504, %v1856
      %1858 = vmatmul.bf16.gmra.mxu0 %v1439
      %v1859 = vpop.f32.mrf.mxu0
      %v1860 = vadd.f32 %v1504, %v1859
      %v1861 = vpop.f32.mrf.mxu0
      %v1862 = vadd.f32 %v1504, %v1861
      %1863 = vmatmul.bf16.gmra.mxu0 %v1441
      %v1864 = vpop.f32.mrf.mxu0
      %v1865 = vadd.f32 %v1504, %v1864
      %v1866 = vpop.f32.mrf.mxu0
      %v1867 = vadd.f32 %v1504, %v1866
      %1868 = vmatmul.bf16.gmra.mxu0 %v1443
      %v1869 = vpop.f32.mrf.mxu0
      %v1870 = vadd.f32 %v1504, %v1869
      %v1871 = vpop.f32.mrf.mxu0
      %v1872 = vadd.f32 %v1504, %v1871
      %1873 = vmatmul.bf16.gmra.mxu0 %v1445
      %v1874 = vpop.f32.mrf.mxu0
      %v1875 = vadd.f32 %v1504, %v1874
      %v1876 = vpop.f32.mrf.mxu0
      %v1877 = vadd.f32 %v1504, %v1876
      %1878 = vmatmul.bf16.gmra.mxu0 %v1447
      %v1879 = vpop.f32.mrf.mxu0
      %v1880 = vadd.f32 %v1504, %v1879
      %v1881 = vpop.f32.mrf.mxu0
      %v1882 = vadd.f32 %v1504, %v1881
      %1883 = vmatmul.bf16.gmra.mxu0 %v1449
      %v1884 = vpop.f32.mrf.mxu0
      %v1885 = vadd.f32 %v1504, %v1884
      %v1886 = vpop.f32.mrf.mxu0
      %v1887 = vadd.f32 %v1504, %v1886
      %1888 = vmatmul.bf16.gmra.mxu0 %v1451
      %v1889 = vpop.f32.mrf.mxu0
      %v1890 = vadd.f32 %v1504, %v1889
      %v1891 = vpop.f32.mrf.mxu0
      %v1892 = vadd.f32 %v1504, %v1891
      %1893 = vmatmul.bf16.gmra.mxu0 %v1453
      %v1894 = vpop.f32.mrf.mxu0
      %v1895 = vadd.f32 %v1504, %v1894
      %v1896 = vpop.f32.mrf.mxu0
      %v1897 = vadd.f32 %v1504, %v1896
      %1898 = vmatmul.bf16.gmra.mxu0 %v1455
      %v1899 = vpop.f32.mrf.mxu0
      %v1900 = vadd.f32 %v1504, %v1899
      %v1901 = vpop.f32.mrf.mxu0
      %v1902 = vadd.f32 %v1504, %v1901
      %1903 = vmatmul.bf16.gmra.mxu0 %v1457
      %v1904 = vpop.f32.mrf.mxu0
      %v1905 = vadd.f32 %v1504, %v1904
      %v1906 = vpop.f32.mrf.mxu0
      %v1907 = vadd.f32 %v1504, %v1906
      %1908 = vmatmul.bf16.gmra.mxu0 %v1459
      %v1909 = vpop.f32.mrf.mxu0
      %v1910 = vadd.f32 %v1504, %v1909
      %v1911 = vpop.f32.mrf.mxu0
      %v1912 = vadd.f32 %v1504, %v1911
      %1913 = vmatmul.bf16.gmra.mxu0 %v1461
      %v1914 = vpop.f32.mrf.mxu0
      %v1915 = vadd.f32 %v1504, %v1914
      %v1916 = vpop.f32.mrf.mxu0
      %v1917 = vadd.f32 %v1504, %v1916
      %1918 = vmatmul.bf16.gmra.mxu0 %v1463
      %v1919 = vpop.f32.mrf.mxu0
      %v1920 = vadd.f32 %v1504, %v1919
      %v1921 = vpop.f32.mrf.mxu0
      %v1922 = vadd.f32 %v1504, %v1921
      %1923 = vmatmul.bf16.gmra.mxu0 %v1465
      %v1924 = vpop.f32.mrf.mxu0
      %v1925 = vadd.f32 %v1504, %v1924
      %v1926 = vpop.f32.mrf.mxu0
      %v1927 = vadd.f32 %v1504, %v1926
      %1928 = vmatmul.bf16.gmra.mxu0 %v1467
      %v1929 = vpop.f32.mrf.mxu0
      %v1930 = vadd.f32 %v1504, %v1929
      %v1931 = vpop.f32.mrf.mxu0
      %v1932 = vadd.f32 %v1504, %v1931
      %1933 = vdwg.mxu0
      %1934 = vmatpush.bf16.msra.mxu0 %v1634
      %1935 = vmatpush.bf16.msra.mxu0 %v1632
      %1936 = vmatpush.bf16.msra.mxu0 %v1630
      %1937 = vmatpush.bf16.msra.mxu0 %v1628
      %1938 = vmatpush.bf16.msra.mxu0 %v1626
      %1939 = vmatpush.bf16.msra.mxu0 %v1624
      %1940 = vmatpush.bf16.msra.mxu0 %v1622
      %1941 = vmatpush.bf16.msra.mxu0 %v1620
      %1942 = vmatmul.bf16.gmra.mxu0 %v1438
      %v1943 = vpop.f32.mrf.mxu0
      %v1944 = vadd.f32 %v1855, %v1943
      %v1945 = vpop.f32.mrf.mxu0
      %v1946 = vadd.f32 %v1857, %v1945
      %1947 = vmatmul.bf16.gmra.mxu0 %v1440
      %v1948 = vpop.f32.mrf.mxu0
      %v1949 = vadd.f32 %v1860, %v1948
      %v1950 = vpop.f32.mrf.mxu0
      %v1951 = vadd.f32 %v1862, %v1950
      %1952 = vmatmul.bf16.gmra.mxu0 %v1442
      %v1953 = vpop.f32.mrf.mxu0
      %v1954 = vadd.f32 %v1865, %v1953
      %v1955 = vpop.f32.mrf.mxu0
      %v1956 = vadd.f32 %v1867, %v1955
      %1957 = vmatmul.bf16.gmra.mxu0 %v1444
      %v1958 = vpop.f32.mrf.mxu0
      %v1959 = vadd.f32 %v1870, %v1958
      %v1960 = vpop.f32.mrf.mxu0
      %v1961 = vadd.f32 %v1872, %v1960
      %1962 = vmatmul.bf16.gmra.mxu0 %v1446
      %v1963 = vpop.f32.mrf.mxu0
      %v1964 = vadd.f32 %v1875, %v1963
      %v1965 = vpop.f32.mrf.mxu0
      %v1966 = vadd.f32 %v1877, %v1965
      %1967 = vmatmul.bf16.gmra.mxu0 %v1448
      %v1968 = vpop.f32.mrf.mxu0
      %v1969 = vadd.f32 %v1880, %v1968
      %v1970 = vpop.f32.mrf.mxu0
      %v1971 = vadd.f32 %v1882, %v1970
      %1972 = vmatmul.bf16.gmra.mxu0 %v1450
      %v1973 = vpop.f32.mrf.mxu0
      %v1974 = vadd.f32 %v1885, %v1973
      %v1975 = vpop.f32.mrf.mxu0
      %v1976 = vadd.f32 %v1887, %v1975
      %1977 = vmatmul.bf16.gmra.mxu0 %v1452
      %v1978 = vpop.f32.mrf.mxu0
      %v1979 = vadd.f32 %v1890, %v1978
      %v1980 = vpop.f32.mrf.mxu0
      %v1981 = vadd.f32 %v1892, %v1980
      %1982 = vmatmul.bf16.gmra.mxu0 %v1454
      %v1983 = vpop.f32.mrf.mxu0
      %v1984 = vadd.f32 %v1895, %v1983
      %v1985 = vpop.f32.mrf.mxu0
      %v1986 = vadd.f32 %v1897, %v1985
      %1987 = vmatmul.bf16.gmra.mxu0 %v1456
      %v1988 = vpop.f32.mrf.mxu0
      %v1989 = vadd.f32 %v1900, %v1988
      %v1990 = vpop.f32.mrf.mxu0
      %v1991 = vadd.f32 %v1902, %v1990
      %1992 = vmatmul.bf16.gmra.mxu0 %v1458
      %v1993 = vpop.f32.mrf.mxu0
      %v1994 = vadd.f32 %v1905, %v1993
      %v1995 = vpop.f32.mrf.mxu0
      %v1996 = vadd.f32 %v1907, %v1995
      %1997 = vmatmul.bf16.gmra.mxu0 %v1460
      %v1998 = vpop.f32.mrf.mxu0
      %v1999 = vadd.f32 %v1910, %v1998
      %v2000 = vpop.f32.mrf.mxu0
      %v2001 = vadd.f32 %v1912, %v2000
      %2002 = vmatmul.bf16.gmra.mxu0 %v1462
      %v2003 = vpop.f32.mrf.mxu0
      %v2004 = vadd.f32 %v1915, %v2003
      %v2005 = vpop.f32.mrf.mxu0
      %v2006 = vadd.f32 %v1917, %v2005
      %2007 = vmatmul.bf16.gmra.mxu0 %v1464
      %v2008 = vpop.f32.mrf.mxu0
      %v2009 = vadd.f32 %v1920, %v2008
      %v2010 = vpop.f32.mrf.mxu0
      %v2011 = vadd.f32 %v1922, %v2010
      %2012 = vmatmul.bf16.gmra.mxu0 %v1466
      %v2013 = vpop.f32.mrf.mxu0
      %v2014 = vadd.f32 %v1925, %v2013
      %v2015 = vpop.f32.mrf.mxu0
      %v2016 = vadd.f32 %v1927, %v2015
      %2017 = vmatmul.bf16.gmra.mxu0 %v1468
      %v2018 = vpop.f32.mrf.mxu0
      %v2019 = vadd.f32 %v1930, %v2018
      %v2020 = vpop.f32.mrf.mxu0
      %v2021 = vadd.f32 %v1932, %v2020
      %2022 = vdwg.mxu0
      %v2023 = vmax.f32 %v1766, 0.0
      %v2024 = vmax.f32 %v1944, 0.0
      %v2025 = vmax.f32 %v1768, 0.0
      %v2026 = vmax.f32 %v1946, 0.0
      %v2027 = vmax.f32 %v1771, 0.0
      %v2028 = vmax.f32 %v1949, 0.0
      %v2029 = vmax.f32 %v1773, 0.0
      %v2030 = vmax.f32 %v1951, 0.0
      %v2031 = vmax.f32 %v1776, 0.0
      %v2032 = vmax.f32 %v1954, 0.0
      %v2033 = vmax.f32 %v1778, 0.0
      %v2034 = vmax.f32 %v1956, 0.0
      %v2035 = vmax.f32 %v1781, 0.0
      %v2036 = vmax.f32 %v1959, 0.0
      %v2037 = vmax.f32 %v1783, 0.0
      %v2038 = vmax.f32 %v1961, 0.0
      %v2039 = vmax.f32 %v1786, 0.0
      %v2040 = vmax.f32 %v1964, 0.0
      %v2041 = vmax.f32 %v1788, 0.0
      %v2042 = vmax.f32 %v1966, 0.0
      %v2043 = vmax.f32 %v1791, 0.0
      %v2044 = vmax.f32 %v1969, 0.0
      %v2045 = vmax.f32 %v1793, 0.0
      %v2046 = vmax.f32 %v1971, 0.0
      %v2047 = vmax.f32 %v1796, 0.0
      %v2048 = vmax.f32 %v1974, 0.0
      %v2049 = vmax.f32 %v1798, 0.0
      %v2050 = vmax.f32 %v1976, 0.0
      %v2051 = vmax.f32 %v1801, 0.0
      %v2052 = vmax.f32 %v1979, 0.0
      %v2053 = vmax.f32 %v1803, 0.0
      %v2054 = vmax.f32 %v1981, 0.0
      %v2055 = vmax.f32 %v1806, 0.0
      %v2056 = vmax.f32 %v1984, 0.0
      %v2057 = vmax.f32 %v1808, 0.0
      %v2058 = vmax.f32 %v1986, 0.0
      %v2059 = vmax.f32 %v1811, 0.0
      %v2060 = vmax.f32 %v1989, 0.0
      %v2061 = vmax.f32 %v1813, 0.0
      %v2062 = vmax.f32 %v1991, 0.0
      %v2063 = vmax.f32 %v1816, 0.0
      %v2064 = vmax.f32 %v1994, 0.0
      %v2065 = vmax.f32 %v1818, 0.0
      %v2066 = vmax.f32 %v1996, 0.0
      %v2067 = vmax.f32 %v1821, 0.0
      %v2068 = vmax.f32 %v1999, 0.0
      %v2069 = vmax.f32 %v1823, 0.0
      %v2070 = vmax.f32 %v2001, 0.0
      %v2071 = vmax.f32 %v1826, 0.0
      %v2072 = vmax.f32 %v2004, 0.0
      %v2073 = vmax.f32 %v1828, 0.0
      %v2074 = vmax.f32 %v2006, 0.0
      %v2075 = vmax.f32 %v1831, 0.0
      %v2076 = vmax.f32 %v2009, 0.0
      %v2077 = vmax.f32 %v1833, 0.0
      %v2078 = vmax.f32 %v2011, 0.0
      %v2079 = vmax.f32 %v1836, 0.0
      %v2080 = vmax.f32 %v2014, 0.0
      %v2081 = vmax.f32 %v1838, 0.0
      %v2082 = vmax.f32 %v2016, 0.0
      %v2083 = vmax.f32 %v1841, 0.0
      %v2084 = vmax.f32 %v2019, 0.0
      %v2085 = vmax.f32 %v1843, 0.0
      %v2086 = vmax.f32 %v2021, 0.0
      %v2087 = vpack.c.bf16 %v2025, %v2023
      %v2088 = vpack.c.bf16 %v2026, %v2024
      %v2089 = vpack.c.bf16 %v2029, %v2027
      %v2090 = vpack.c.bf16 %v2030, %v2028
      %v2091 = vpack.c.bf16 %v2033, %v2031
      %v2092 = vpack.c.bf16 %v2034, %v2032
      %v2093 = vpack.c.bf16 %v2037, %v2035
      %v2094 = vpack.c.bf16 %v2038, %v2036
      %v2095 = vpack.c.bf16 %v2041, %v2039
      %v2096 = vpack.c.bf16 %v2042, %v2040
      %v2097 = vpack.c.bf16 %v2045, %v2043
      %v2098 = vpack.c.bf16 %v2046, %v2044
      %v2099 = vpack.c.bf16 %v2049, %v2047
      %v2100 = vpack.c.bf16 %v2050, %v2048
      %v2101 = vpack.c.bf16 %v2053, %v2051
      %v2102 = vpack.c.bf16 %v2054, %v2052
      %v2103 = vpack.c.bf16 %v2057, %v2055
      %v2104 = vpack.c.bf16 %v2058, %v2056
      %v2105 = vpack.c.bf16 %v2061, %v2059
      %v2106 = vpack.c.bf16 %v2062, %v2060
      %v2107 = vpack.c.bf16 %v2065, %v2063
      %v2108 = vpack.c.bf16 %v2066, %v2064
      %v2109 = vpack.c.bf16 %v2069, %v2067
      %v2110 = vpack.c.bf16 %v2070, %v2068
      %v2111 = vpack.c.bf16 %v2073, %v2071
      %v2112 = vpack.c.bf16 %v2074, %v2072
      %v2113 = vpack.c.bf16 %v2077, %v2075
      %v2114 = vpack.c.bf16 %v2078, %v2076
      %v2115 = vpack.c.bf16 %v2081, %v2079
      %v2116 = vpack.c.bf16 %v2082, %v2080
      %v2117 = vpack.c.bf16 %v2085, %v2083
      %v2118 = vpack.c.bf16 %v2086, %v2084
      %v2119 = vld [vmem:[%s7] sm:$0xff]
      %v2120 = vld [vmem:[%s7 + $0x8] sm:$0xff]
      %v2121 = vld [vmem:[%s7 + $0x10] sm:$0xff]
      %v2122 = vld [vmem:[%s7 + $0x18] sm:$0xff]
      %v2123 = vld [vmem:[%s7 + $0x20] sm:$0xff]
      %v2124 = vld [vmem:[%s7 + $0x28] sm:$0xff]
      %v2125 = vld [vmem:[%s7 + $0x30] sm:$0xff]
      %v2126 = vld [vmem:[%s7 + $0x38] sm:$0xff]
      %v2127 = vld [vmem:[%s7 + $0x40] sm:$0xff]
      %v2128 = vld [vmem:[%s7 + $0x48] sm:$0xff]
      %v2129 = vld [vmem:[%s7 + $0x50] sm:$0xff]
      %v2130 = vld [vmem:[%s7 + $0x58] sm:$0xff]
      %v2131 = vld [vmem:[%s7 + $0x60] sm:$0xff]
      %v2132 = vld [vmem:[%s7 + $0x68] sm:$0xff]
      %v2133 = vld [vmem:[%s7 + $0x70] sm:$0xff]
      %v2134 = vld [vmem:[%s7 + $0x78] sm:$0xff]
      %v2135 = vld [vmem:[%s7 + $0x80] sm:$0xff]
      %v2136 = vld [vmem:[%s7 + $0x88] sm:$0xff]
      %v2137 = vld [vmem:[%s7 + $0x90] sm:$0xff]
      %v2138 = vld [vmem:[%s7 + $0x98] sm:$0xff]
      %v2139 = vld [vmem:[%s7 + $0xa0] sm:$0xff]
      %v2140 = vld [vmem:[%s7 + $0xa8] sm:$0xff]
      %v2141 = vld [vmem:[%s7 + $0xb0] sm:$0xff]
      %v2142 = vld [vmem:[%s7 + $0xb8] sm:$0xff]
      %v2143 = vld [vmem:[%s7 + $0xc0] sm:$0xff]
      %v2144 = vld [vmem:[%s7 + $0xc8] sm:$0xff]
      %v2145 = vld [vmem:[%s7 + $0xd0] sm:$0xff]
      %v2146 = vld [vmem:[%s7 + $0xd8] sm:$0xff]
      %v2147 = vld [vmem:[%s7 + $0xe0] sm:$0xff]
      %v2148 = vld [vmem:[%s7 + $0xe8] sm:$0xff]
      %v2149 = vld [vmem:[%s7 + $0xf0] sm:$0xff]
      %v2150 = vld [vmem:[%s7 + $0xf8] sm:$0xff]
      %v2151 = vld [vmem:[%s8] sm:$0x3]
      %v2153 = vperm.slane %v2151, 0
      %v2154 = vperm.slane %v2151, 1
      %v2189 = vunpack.c.l.b16 %v2119
      %v2190 = vunpack.c.h.b16 %v2119
      %v2191 = vunpack.c.l.b16 %v2120
      %v2192 = vunpack.c.h.b16 %v2120
      %v2193 = vunpack.c.l.b16 %v2121
      %v2194 = vunpack.c.h.b16 %v2121
      %v2195 = vunpack.c.l.b16 %v2122
      %v2196 = vunpack.c.h.b16 %v2122
      %v2197 = vunpack.c.l.b16 %v2123
      %v2198 = vunpack.c.h.b16 %v2123
      %v2199 = vunpack.c.l.b16 %v2124
      %v2200 = vunpack.c.h.b16 %v2124
      %v2201 = vunpack.c.l.b16 %v2125
      %v2202 = vunpack.c.h.b16 %v2125
      %v2203 = vunpack.c.l.b16 %v2126
      %v2204 = vunpack.c.h.b16 %v2126
      %v2205 = vunpack.c.l.b16 %v2127
      %v2206 = vunpack.c.h.b16 %v2127
      %v2207 = vunpack.c.l.b16 %v2128
      %v2208 = vunpack.c.h.b16 %v2128
      %v2209 = vunpack.c.l.b16 %v2129
      %v2210 = vunpack.c.h.b16 %v2129
      %v2211 = vunpack.c.l.b16 %v2130
      %v2212 = vunpack.c.h.b16 %v2130
      %v2213 = vunpack.c.l.b16 %v2131
      %v2214 = vunpack.c.h.b16 %v2131
      %v2215 = vunpack.c.l.b16 %v2132
      %v2216 = vunpack.c.h.b16 %v2132
      %v2217 = vunpack.c.l.b16 %v2133
      %v2218 = vunpack.c.h.b16 %v2133
      %v2219 = vunpack.c.l.b16 %v2134
      %v2220 = vunpack.c.h.b16 %v2134
      %v2221 = vunpack.c.l.b16 %v2135
      %v2222 = vunpack.c.h.b16 %v2135
      %v2223 = vunpack.c.l.b16 %v2136
      %v2224 = vunpack.c.h.b16 %v2136
      %v2225 = vunpack.c.l.b16 %v2137
      %v2226 = vunpack.c.h.b16 %v2137
      %v2227 = vunpack.c.l.b16 %v2138
      %v2228 = vunpack.c.h.b16 %v2138
      %v2229 = vunpack.c.l.b16 %v2139
      %v2230 = vunpack.c.h.b16 %v2139
      %v2231 = vunpack.c.l.b16 %v2140
      %v2232 = vunpack.c.h.b16 %v2140
      %v2233 = vunpack.c.l.b16 %v2141
      %v2234 = vunpack.c.h.b16 %v2141
      %v2235 = vunpack.c.l.b16 %v2142
      %v2236 = vunpack.c.h.b16 %v2142
      %v2237 = vunpack.c.l.b16 %v2143
      %v2238 = vunpack.c.h.b16 %v2143
      %v2239 = vunpack.c.l.b16 %v2144
      %v2240 = vunpack.c.h.b16 %v2144
      %v2241 = vunpack.c.l.b16 %v2145
      %v2242 = vunpack.c.h.b16 %v2145
      %v2243 = vunpack.c.l.b16 %v2146
      %v2244 = vunpack.c.h.b16 %v2146
      %v2245 = vunpack.c.l.b16 %v2147
      %v2246 = vunpack.c.h.b16 %v2147
      %v2247 = vunpack.c.l.b16 %v2148
      %v2248 = vunpack.c.h.b16 %v2148
      %v2249 = vunpack.c.l.b16 %v2149
      %v2250 = vunpack.c.h.b16 %v2149
      %v2251 = vunpack.c.l.b16 %v2150
      %v2252 = vunpack.c.h.b16 %v2150
      %v2253 = vpack.c.b16 %v2191, %v2189
      %v2254 = vpack.c.b16 %v2192, %v2190
      %v2255 = vpack.c.b16 %v2195, %v2193
      %v2256 = vpack.c.b16 %v2196, %v2194
      %v2257 = vpack.c.b16 %v2199, %v2197
      %v2258 = vpack.c.b16 %v2200, %v2198
      %v2259 = vpack.c.b16 %v2203, %v2201
      %v2260 = vpack.c.b16 %v2204, %v2202
      %v2261 = vpack.c.b16 %v2207, %v2205
      %v2262 = vpack.c.b16 %v2208, %v2206
      %v2263 = vpack.c.b16 %v2211, %v2209
      %v2264 = vpack.c.b16 %v2212, %v2210
      %v2265 = vpack.c.b16 %v2215, %v2213
      %v2266 = vpack.c.b16 %v2216, %v2214
      %v2267 = vpack.c.b16 %v2219, %v2217
      %v2268 = vpack.c.b16 %v2220, %v2218
      %v2269 = vpack.c.b16 %v2223, %v2221
      %v2270 = vpack.c.b16 %v2224, %v2222
      %v2271 = vpack.c.b16 %v2227, %v2225
      %v2272 = vpack.c.b16 %v2228, %v2226
      %v2273 = vpack.c.b16 %v2231, %v2229
      %v2274 = vpack.c.b16 %v2232, %v2230
      %v2275 = vpack.c.b16 %v2235, %v2233
      %v2276 = vpack.c.b16 %v2236, %v2234
      %v2277 = vpack.c.b16 %v2239, %v2237
      %v2278 = vpack.c.b16 %v2240, %v2238
      %v2279 = vpack.c.b16 %v2243, %v2241
      %v2280 = vpack.c.b16 %v2244, %v2242
      %v2281 = vpack.c.b16 %v2247, %v2245
      %v2282 = vpack.c.b16 %v2248, %v2246
      %v2283 = vpack.c.b16 %v2251, %v2249
      %v2284 = vpack.c.b16 %v2252, %v2250
      %2317 = vmatpush.bf16.msra.mxu0 %v2267
      %2318 = vmatpush.bf16.msra.mxu0 %v2265
      %2319 = vmatpush.bf16.msra.mxu0 %v2263
      %2320 = vmatpush.bf16.msra.mxu0 %v2261
      %2321 = vmatpush.bf16.msra.mxu0 %v2259
      %2322 = vmatpush.bf16.msra.mxu0 %v2257
      %2323 = vmatpush.bf16.msra.mxu0 %v2255
      %2324 = vmatpush.bf16.msra.mxu0 %v2253
      %2325 = vmatmul.bf16.gmra.mxu0 %v2087
      %v2326 = vpop.f32.mrf.mxu0
      %v2327 = vadd.f32 %v2153, %v2326
      %v2328 = vpop.f32.mrf.mxu0
      %v2329 = vadd.f32 %v2153, %v2328
      %2330 = vmatmul.bf16.gmra.mxu0 %v2089
      %v2331 = vpop.f32.mrf.mxu0
      %v2332 = vadd.f32 %v2153, %v2331
      %v2333 = vpop.f32.mrf.mxu0
      %v2334 = vadd.f32 %v2153, %v2333
      %2335 = vmatmul.bf16.gmra.mxu0 %v2091
      %v2336 = vpop.f32.mrf.mxu0
      %v2337 = vadd.f32 %v2153, %v2336
      %v2338 = vpop.f32.mrf.mxu0
      %v2339 = vadd.f32 %v2153, %v2338
      %2340 = vmatmul.bf16.gmra.mxu0 %v2093
      %v2341 = vpop.f32.mrf.mxu0
      %v2342 = vadd.f32 %v2153, %v2341
      %v2343 = vpop.f32.mrf.mxu0
      %v2344 = vadd.f32 %v2153, %v2343
      %2345 = vmatmul.bf16.gmra.mxu0 %v2095
      %v2346 = vpop.f32.mrf.mxu0
      %v2347 = vadd.f32 %v2153, %v2346
      %v2348 = vpop.f32.mrf.mxu0
      %v2349 = vadd.f32 %v2153, %v2348
      %2350 = vmatmul.bf16.gmra.mxu0 %v2097
      %v2351 = vpop.f32.mrf.mxu0
      %v2352 = vadd.f32 %v2153, %v2351
      %v2353 = vpop.f32.mrf.mxu0
      %v2354 = vadd.f32 %v2153, %v2353
      %2355 = vmatmul.bf16.gmra.mxu0 %v2099
      %v2356 = vpop.f32.mrf.mxu0
      %v2357 = vadd.f32 %v2153, %v2356
      %v2358 = vpop.f32.mrf.mxu0
      %v2359 = vadd.f32 %v2153, %v2358
      %2360 = vmatmul.bf16.gmra.mxu0 %v2101
      %v2361 = vpop.f32.mrf.mxu0
      %v2362 = vadd.f32 %v2153, %v2361
      %v2363 = vpop.f32.mrf.mxu0
      %v2364 = vadd.f32 %v2153, %v2363
      %2365 = vmatmul.bf16.gmra.mxu0 %v2103
      %v2366 = vpop.f32.mrf.mxu0
      %v2367 = vadd.f32 %v2153, %v2366
      %v2368 = vpop.f32.mrf.mxu0
      %v2369 = vadd.f32 %v2153, %v2368
      %2370 = vmatmul.bf16.gmra.mxu0 %v2105
      %v2371 = vpop.f32.mrf.mxu0
      %v2372 = vadd.f32 %v2153, %v2371
      %v2373 = vpop.f32.mrf.mxu0
      %v2374 = vadd.f32 %v2153, %v2373
      %2375 = vmatmul.bf16.gmra.mxu0 %v2107
      %v2376 = vpop.f32.mrf.mxu0
      %v2377 = vadd.f32 %v2153, %v2376
      %v2378 = vpop.f32.mrf.mxu0
      %v2379 = vadd.f32 %v2153, %v2378
      %2380 = vmatmul.bf16.gmra.mxu0 %v2109
      %v2381 = vpop.f32.mrf.mxu0
      %v2382 = vadd.f32 %v2153, %v2381
      %v2383 = vpop.f32.mrf.mxu0
      %v2384 = vadd.f32 %v2153, %v2383
      %2385 = vmatmul.bf16.gmra.mxu0 %v2111
      %v2386 = vpop.f32.mrf.mxu0
      %v2387 = vadd.f32 %v2153, %v2386
      %v2388 = vpop.f32.mrf.mxu0
      %v2389 = vadd.f32 %v2153, %v2388
      %2390 = vmatmul.bf16.gmra.mxu0 %v2113
      %v2391 = vpop.f32.mrf.mxu0
      %v2392 = vadd.f32 %v2153, %v2391
      %v2393 = vpop.f32.mrf.mxu0
      %v2394 = vadd.f32 %v2153, %v2393
      %2395 = vmatmul.bf16.gmra.mxu0 %v2115
      %v2396 = vpop.f32.mrf.mxu0
      %v2397 = vadd.f32 %v2153, %v2396
      %v2398 = vpop.f32.mrf.mxu0
      %v2399 = vadd.f32 %v2153, %v2398
      %2400 = vmatmul.bf16.gmra.mxu0 %v2117
      %v2401 = vpop.f32.mrf.mxu0
      %v2402 = vadd.f32 %v2153, %v2401
      %v2403 = vpop.f32.mrf.mxu0
      %v2404 = vadd.f32 %v2153, %v2403
      %2405 = vdwg.mxu0
      %2406 = vmatpush.bf16.msra.mxu0 %v2283
      %2407 = vmatpush.bf16.msra.mxu0 %v2281
      %2408 = vmatpush.bf16.msra.mxu0 %v2279
      %2409 = vmatpush.bf16.msra.mxu0 %v2277
      %2410 = vmatpush.bf16.msra.mxu0 %v2275
      %2411 = vmatpush.bf16.msra.mxu0 %v2273
      %2412 = vmatpush.bf16.msra.mxu0 %v2271
      %2413 = vmatpush.bf16.msra.mxu0 %v2269
      %2414 = vmatmul.bf16.gmra.mxu0 %v2088
      %v2415 = vpop.f32.mrf.mxu0
      %v2416 = vadd.f32 %v2327, %v2415
      %v2417 = vpop.f32.mrf.mxu0
      %v2418 = vadd.f32 %v2329, %v2417
      %2419 = vmatmul.bf16.gmra.mxu0 %v2090
      %v2420 = vpop.f32.mrf.mxu0
      %v2421 = vadd.f32 %v2332, %v2420
      %v2422 = vpop.f32.mrf.mxu0
      %v2423 = vadd.f32 %v2334, %v2422
      %2424 = vmatmul.bf16.gmra.mxu0 %v2092
      %v2425 = vpop.f32.mrf.mxu0
      %v2426 = vadd.f32 %v2337, %v2425
      %v2427 = vpop.f32.mrf.mxu0
      %v2428 = vadd.f32 %v2339, %v2427
      %2429 = vmatmul.bf16.gmra.mxu0 %v2094
      %v2430 = vpop.f32.mrf.mxu0
      %v2431 = vadd.f32 %v2342, %v2430
      %v2432 = vpop.f32.mrf.mxu0
      %v2433 = vadd.f32 %v2344, %v2432
      %2434 = vmatmul.bf16.gmra.mxu0 %v2096
      %v2435 = vpop.f32.mrf.mxu0
      %v2436 = vadd.f32 %v2347, %v2435
      %v2437 = vpop.f32.mrf.mxu0
      %v2438 = vadd.f32 %v2349, %v2437
      %2439 = vmatmul.bf16.gmra.mxu0 %v2098
      %v2440 = vpop.f32.mrf.mxu0
      %v2441 = vadd.f32 %v2352, %v2440
      %v2442 = vpop.f32.mrf.mxu0
      %v2443 = vadd.f32 %v2354, %v2442
      %2444 = vmatmul.bf16.gmra.mxu0 %v2100
      %v2445 = vpop.f32.mrf.mxu0
      %v2446 = vadd.f32 %v2357, %v2445
      %v2447 = vpop.f32.mrf.mxu0
      %v2448 = vadd.f32 %v2359, %v2447
      %2449 = vmatmul.bf16.gmra.mxu0 %v2102
      %v2450 = vpop.f32.mrf.mxu0
      %v2451 = vadd.f32 %v2362, %v2450
      %v2452 = vpop.f32.mrf.mxu0
      %v2453 = vadd.f32 %v2364, %v2452
      %2454 = vmatmul.bf16.gmra.mxu0 %v2104
      %v2455 = vpop.f32.mrf.mxu0
      %v2456 = vadd.f32 %v2367, %v2455
      %v2457 = vpop.f32.mrf.mxu0
      %v2458 = vadd.f32 %v2369, %v2457
      %2459 = vmatmul.bf16.gmra.mxu0 %v2106
      %v2460 = vpop.f32.mrf.mxu0
      %v2461 = vadd.f32 %v2372, %v2460
      %v2462 = vpop.f32.mrf.mxu0
      %v2463 = vadd.f32 %v2374, %v2462
      %2464 = vmatmul.bf16.gmra.mxu0 %v2108
      %v2465 = vpop.f32.mrf.mxu0
      %v2466 = vadd.f32 %v2377, %v2465
      %v2467 = vpop.f32.mrf.mxu0
      %v2468 = vadd.f32 %v2379, %v2467
      %2469 = vmatmul.bf16.gmra.mxu0 %v2110
      %v2470 = vpop.f32.mrf.mxu0
      %v2471 = vadd.f32 %v2382, %v2470
      %v2472 = vpop.f32.mrf.mxu0
      %v2473 = vadd.f32 %v2384, %v2472
      %2474 = vmatmul.bf16.gmra.mxu0 %v2112
      %v2475 = vpop.f32.mrf.mxu0
      %v2476 = vadd.f32 %v2387, %v2475
      %v2477 = vpop.f32.mrf.mxu0
      %v2478 = vadd.f32 %v2389, %v2477
      %2479 = vmatmul.bf16.gmra.mxu0 %v2114
      %v2480 = vpop.f32.mrf.mxu0
      %v2481 = vadd.f32 %v2392, %v2480
      %v2482 = vpop.f32.mrf.mxu0
      %v2483 = vadd.f32 %v2394, %v2482
      %2484 = vmatmul.bf16.gmra.mxu0 %v2116
      %v2485 = vpop.f32.mrf.mxu0
      %v2486 = vadd.f32 %v2397, %v2485
      %v2487 = vpop.f32.mrf.mxu0
      %v2488 = vadd.f32 %v2399, %v2487
      %2489 = vmatmul.bf16.gmra.mxu0 %v2118
      %v2490 = vpop.f32.mrf.mxu0
      %v2491 = vadd.f32 %v2402, %v2490
      %v2492 = vpop.f32.mrf.mxu0
      %v2493 = vadd.f32 %v2404, %v2492
      %2494 = vdwg.mxu0
      %2495 = vmatpush.bf16.msra.mxu0 %v2268
      %2496 = vmatpush.bf16.msra.mxu0 %v2266
      %2497 = vmatpush.bf16.msra.mxu0 %v2264
      %2498 = vmatpush.bf16.msra.mxu0 %v2262
      %2499 = vmatpush.bf16.msra.mxu0 %v2260
      %2500 = vmatpush.bf16.msra.mxu0 %v2258
      %2501 = vmatpush.bf16.msra.mxu0 %v2256
      %2502 = vmatpush.bf16.msra.mxu0 %v2254
      %2503 = vmatmul.bf16.gmra.mxu0 %v2087
      %v2504 = vpop.f32.mrf.mxu0
      %v2505 = vadd.f32 %v2154, %v2504
      %v2506 = vpop.f32.mrf.mxu0
      %v2507 = vadd.f32 %v2154, %v2506
      %2508 = vmatmul.bf16.gmra.mxu0 %v2089
      %v2509 = vpop.f32.mrf.mxu0
      %v2510 = vadd.f32 %v2154, %v2509
      %v2511 = vpop.f32.mrf.mxu0
      %v2512 = vadd.f32 %v2154, %v2511
      %2513 = vmatmul.bf16.gmra.mxu0 %v2091
      %v2514 = vpop.f32.mrf.mxu0
      %v2515 = vadd.f32 %v2154, %v2514
      %v2516 = vpop.f32.mrf.mxu0
      %v2517 = vadd.f32 %v2154, %v2516
      %2518 = vmatmul.bf16.gmra.mxu0 %v2093
      %v2519 = vpop.f32.mrf.mxu0
      %v2520 = vadd.f32 %v2154, %v2519
      %v2521 = vpop.f32.mrf.mxu0
      %v2522 = vadd.f32 %v2154, %v2521
      %2523 = vmatmul.bf16.gmra.mxu0 %v2095
      %v2524 = vpop.f32.mrf.mxu0
      %v2525 = vadd.f32 %v2154, %v2524
      %v2526 = vpop.f32.mrf.mxu0
      %v2527 = vadd.f32 %v2154, %v2526
      %2528 = vmatmul.bf16.gmra.mxu0 %v2097
      %v2529 = vpop.f32.mrf.mxu0
      %v2530 = vadd.f32 %v2154, %v2529
      %v2531 = vpop.f32.mrf.mxu0
      %v2532 = vadd.f32 %v2154, %v2531
      %2533 = vmatmul.bf16.gmra.mxu0 %v2099
      %v2534 = vpop.f32.mrf.mxu0
      %v2535 = vadd.f32 %v2154, %v2534
      %v2536 = vpop.f32.mrf.mxu0
      %v2537 = vadd.f32 %v2154, %v2536
      %2538 = vmatmul.bf16.gmra.mxu0 %v2101
      %v2539 = vpop.f32.mrf.mxu0
      %v2540 = vadd.f32 %v2154, %v2539
      %v2541 = vpop.f32.mrf.mxu0
      %v2542 = vadd.f32 %v2154, %v2541
      %2543 = vmatmul.bf16.gmra.mxu0 %v2103
      %v2544 = vpop.f32.mrf.mxu0
      %v2545 = vadd.f32 %v2154, %v2544
      %v2546 = vpop.f32.mrf.mxu0
      %v2547 = vadd.f32 %v2154, %v2546
      %2548 = vmatmul.bf16.gmra.mxu0 %v2105
      %v2549 = vpop.f32.mrf.mxu0
      %v2550 = vadd.f32 %v2154, %v2549
      %v2551 = vpop.f32.mrf.mxu0
      %v2552 = vadd.f32 %v2154, %v2551
      %2553 = vmatmul.bf16.gmra.mxu0 %v2107
      %v2554 = vpop.f32.mrf.mxu0
      %v2555 = vadd.f32 %v2154, %v2554
      %v2556 = vpop.f32.mrf.mxu0
      %v2557 = vadd.f32 %v2154, %v2556
      %2558 = vmatmul.bf16.gmra.mxu0 %v2109
      %v2559 = vpop.f32.mrf.mxu0
      %v2560 = vadd.f32 %v2154, %v2559
      %v2561 = vpop.f32.mrf.mxu0
      %v2562 = vadd.f32 %v2154, %v2561
      %2563 = vmatmul.bf16.gmra.mxu0 %v2111
      %v2564 = vpop.f32.mrf.mxu0
      %v2565 = vadd.f32 %v2154, %v2564
      %v2566 = vpop.f32.mrf.mxu0
      %v2567 = vadd.f32 %v2154, %v2566
      %2568 = vmatmul.bf16.gmra.mxu0 %v2113
      %v2569 = vpop.f32.mrf.mxu0
      %v2570 = vadd.f32 %v2154, %v2569
      %v2571 = vpop.f32.mrf.mxu0
      %v2572 = vadd.f32 %v2154, %v2571
      %2573 = vmatmul.bf16.gmra.mxu0 %v2115
      %v2574 = vpop.f32.mrf.mxu0
      %v2575 = vadd.f32 %v2154, %v2574
      %v2576 = vpop.f32.mrf.mxu0
      %v2577 = vadd.f32 %v2154, %v2576
      %2578 = vmatmul.bf16.gmra.mxu0 %v2117
      %v2579 = vpop.f32.mrf.mxu0
      %v2580 = vadd.f32 %v2154, %v2579
      %v2581 = vpop.f32.mrf.mxu0
      %v2582 = vadd.f32 %v2154, %v2581
      %2583 = vdwg.mxu0
      %2584 = vmatpush.bf16.msra.mxu0 %v2284
      %2585 = vmatpush.bf16.msra.mxu0 %v2282
      %2586 = vmatpush.bf16.msra.mxu0 %v2280
      %2587 = vmatpush.bf16.msra.mxu0 %v2278
      %2588 = vmatpush.bf16.msra.mxu0 %v2276
      %2589 = vmatpush.bf16.msra.mxu0 %v2274
      %2590 = vmatpush.bf16.msra.mxu0 %v2272
      %2591 = vmatpush.bf16.msra.mxu0 %v2270
      %2592 = vmatmul.bf16.gmra.mxu0 %v2088
      %v2593 = vpop.f32.mrf.mxu0
      %v2594 = vadd.f32 %v2505, %v2593
      %v2595 = vpop.f32.mrf.mxu0
      %v2596 = vadd.f32 %v2507, %v2595
      %2597 = vmatmul.bf16.gmra.mxu0 %v2090
      %v2598 = vpop.f32.mrf.mxu0
      %v2599 = vadd.f32 %v2510, %v2598
      %v2600 = vpop.f32.mrf.mxu0
      %v2601 = vadd.f32 %v2512, %v2600
      %2602 = vmatmul.bf16.gmra.mxu0 %v2092
      %v2603 = vpop.f32.mrf.mxu0
      %v2604 = vadd.f32 %v2515, %v2603
      %v2605 = vpop.f32.mrf.mxu0
      %v2606 = vadd.f32 %v2517, %v2605
      %2607 = vmatmul.bf16.gmra.mxu0 %v2094
      %v2608 = vpop.f32.mrf.mxu0
      %v2609 = vadd.f32 %v2520, %v2608
      %v2610 = vpop.f32.mrf.mxu0
      %v2611 = vadd.f32 %v2522, %v2610
      %2612 = vmatmul.bf16.gmra.mxu0 %v2096
      %v2613 = vpop.f32.mrf.mxu0
      %v2614 = vadd.f32 %v2525, %v2613
      %v2615 = vpop.f32.mrf.mxu0
      %v2616 = vadd.f32 %v2527, %v2615
      %2617 = vmatmul.bf16.gmra.mxu0 %v2098
      %v2618 = vpop.f32.mrf.mxu0
      %v2619 = vadd.f32 %v2530, %v2618
      %v2620 = vpop.f32.mrf.mxu0
      %v2621 = vadd.f32 %v2532, %v2620
      %2622 = vmatmul.bf16.gmra.mxu0 %v2100
      %v2623 = vpop.f32.mrf.mxu0
      %v2624 = vadd.f32 %v2535, %v2623
      %v2625 = vpop.f32.mrf.mxu0
      %v2626 = vadd.f32 %v2537, %v2625
      %2627 = vmatmul.bf16.gmra.mxu0 %v2102
      %v2628 = vpop.f32.mrf.mxu0
      %v2629 = vadd.f32 %v2540, %v2628
      %v2630 = vpop.f32.mrf.mxu0
      %v2631 = vadd.f32 %v2542, %v2630
      %2632 = vmatmul.bf16.gmra.mxu0 %v2104
      %v2633 = vpop.f32.mrf.mxu0
      %v2634 = vadd.f32 %v2545, %v2633
      %v2635 = vpop.f32.mrf.mxu0
      %v2636 = vadd.f32 %v2547, %v2635
      %2637 = vmatmul.bf16.gmra.mxu0 %v2106
      %v2638 = vpop.f32.mrf.mxu0
      %v2639 = vadd.f32 %v2550, %v2638
      %v2640 = vpop.f32.mrf.mxu0
      %v2641 = vadd.f32 %v2552, %v2640
      %2642 = vmatmul.bf16.gmra.mxu0 %v2108
      %v2643 = vpop.f32.mrf.mxu0
      %v2644 = vadd.f32 %v2555, %v2643
      %v2645 = vpop.f32.mrf.mxu0
      %v2646 = vadd.f32 %v2557, %v2645
      %2647 = vmatmul.bf16.gmra.mxu0 %v2110
      %v2648 = vpop.f32.mrf.mxu0
      %v2649 = vadd.f32 %v2560, %v2648
      %v2650 = vpop.f32.mrf.mxu0
      %v2651 = vadd.f32 %v2562, %v2650
      %2652 = vmatmul.bf16.gmra.mxu0 %v2112
      %v2653 = vpop.f32.mrf.mxu0
      %v2654 = vadd.f32 %v2565, %v2653
      %v2655 = vpop.f32.mrf.mxu0
      %v2656 = vadd.f32 %v2567, %v2655
      %2657 = vmatmul.bf16.gmra.mxu0 %v2114
      %v2658 = vpop.f32.mrf.mxu0
      %v2659 = vadd.f32 %v2570, %v2658
      %v2660 = vpop.f32.mrf.mxu0
      %v2661 = vadd.f32 %v2572, %v2660
      %2662 = vmatmul.bf16.gmra.mxu0 %v2116
      %v2663 = vpop.f32.mrf.mxu0
      %v2664 = vadd.f32 %v2575, %v2663
      %v2665 = vpop.f32.mrf.mxu0
      %v2666 = vadd.f32 %v2577, %v2665
      %2667 = vmatmul.bf16.gmra.mxu0 %v2118
      %v2668 = vpop.f32.mrf.mxu0
      %v2669 = vadd.f32 %v2580, %v2668
      %v2670 = vpop.f32.mrf.mxu0
      %v2671 = vadd.f32 %v2582, %v2670
      %2672 = vdwg.mxu0
      %v2673 = vmax.f32 %v2416, 0.0
      %v2674 = vmax.f32 %v2594, 0.0
      %v2675 = vmax.f32 %v2418, 0.0
      %v2676 = vmax.f32 %v2596, 0.0
      %v2677 = vmax.f32 %v2421, 0.0
      %v2678 = vmax.f32 %v2599, 0.0
      %v2679 = vmax.f32 %v2423, 0.0
      %v2680 = vmax.f32 %v2601, 0.0
      %v2681 = vmax.f32 %v2426, 0.0
      %v2682 = vmax.f32 %v2604, 0.0
      %v2683 = vmax.f32 %v2428, 0.0
      %v2684 = vmax.f32 %v2606, 0.0
      %v2685 = vmax.f32 %v2431, 0.0
      %v2686 = vmax.f32 %v2609, 0.0
      %v2687 = vmax.f32 %v2433, 0.0
      %v2688 = vmax.f32 %v2611, 0.0
      %v2689 = vmax.f32 %v2436, 0.0
      %v2690 = vmax.f32 %v2614, 0.0
      %v2691 = vmax.f32 %v2438, 0.0
      %v2692 = vmax.f32 %v2616, 0.0
      %v2693 = vmax.f32 %v2441, 0.0
      %v2694 = vmax.f32 %v2619, 0.0
      %v2695 = vmax.f32 %v2443, 0.0
      %v2696 = vmax.f32 %v2621, 0.0
      %v2697 = vmax.f32 %v2446, 0.0
      %v2698 = vmax.f32 %v2624, 0.0
      %v2699 = vmax.f32 %v2448, 0.0
      %v2700 = vmax.f32 %v2626, 0.0
      %v2701 = vmax.f32 %v2451, 0.0
      %v2702 = vmax.f32 %v2629, 0.0
      %v2703 = vmax.f32 %v2453, 0.0
      %v2704 = vmax.f32 %v2631, 0.0
      %v2705 = vmax.f32 %v2456, 0.0
      %v2706 = vmax.f32 %v2634, 0.0
      %v2707 = vmax.f32 %v2458, 0.0
      %v2708 = vmax.f32 %v2636, 0.0
      %v2709 = vmax.f32 %v2461, 0.0
      %v2710 = vmax.f32 %v2639, 0.0
      %v2711 = vmax.f32 %v2463, 0.0
      %v2712 = vmax.f32 %v2641, 0.0
      %v2713 = vmax.f32 %v2466, 0.0
      %v2714 = vmax.f32 %v2644, 0.0
      %v2715 = vmax.f32 %v2468, 0.0
      %v2716 = vmax.f32 %v2646, 0.0
      %v2717 = vmax.f32 %v2471, 0.0
      %v2718 = vmax.f32 %v2649, 0.0
      %v2719 = vmax.f32 %v2473, 0.0
      %v2720 = vmax.f32 %v2651, 0.0
      %v2721 = vmax.f32 %v2476, 0.0
      %v2722 = vmax.f32 %v2654, 0.0
      %v2723 = vmax.f32 %v2478, 0.0
      %v2724 = vmax.f32 %v2656, 0.0
      %v2725 = vmax.f32 %v2481, 0.0
      %v2726 = vmax.f32 %v2659, 0.0
      %v2727 = vmax.f32 %v2483, 0.0
      %v2728 = vmax.f32 %v2661, 0.0
      %v2729 = vmax.f32 %v2486, 0.0
      %v2730 = vmax.f32 %v2664, 0.0
      %v2731 = vmax.f32 %v2488, 0.0
      %v2732 = vmax.f32 %v2666, 0.0
      %v2733 = vmax.f32 %v2491, 0.0
      %v2734 = vmax.f32 %v2669, 0.0
      %v2735 = vmax.f32 %v2493, 0.0
      %v2736 = vmax.f32 %v2671, 0.0
      %v2737 = vld [vmem:[%s9] sm:$0x3]
      %v2739 = vperm.slane %v2737, 0
      %v2740 = vperm.slane %v2737, 1
      %v2743 = vmul.f32 %v2673, %v2739
      %v2744 = vmul.f32 %v2674, %v2740
      %v2745 = vmul.f32 %v2675, %v2739
      %v2746 = vmul.f32 %v2676, %v2740
      %v2747 = vmul.f32 %v2677, %v2739
      %v2748 = vmul.f32 %v2678, %v2740
      %v2749 = vmul.f32 %v2679, %v2739
      %v2750 = vmul.f32 %v2680, %v2740
      %v2751 = vmul.f32 %v2681, %v2739
      %v2752 = vmul.f32 %v2682, %v2740
      %v2753 = vmul.f32 %v2683, %v2739
      %v2754 = vmul.f32 %v2684, %v2740
      %v2755 = vmul.f32 %v2685, %v2739
      %v2756 = vmul.f32 %v2686, %v2740
      %v2757 = vmul.f32 %v2687, %v2739
      %v2758 = vmul.f32 %v2688, %v2740
      %v2759 = vmul.f32 %v2689, %v2739
      %v2760 = vmul.f32 %v2690, %v2740
      %v2761 = vmul.f32 %v2691, %v2739
      %v2762 = vmul.f32 %v2692, %v2740
      %v2763 = vmul.f32 %v2693, %v2739
      %v2764 = vmul.f32 %v2694, %v2740
      %v2765 = vmul.f32 %v2695, %v2739
      %v2766 = vmul.f32 %v2696, %v2740
      %v2767 = vmul.f32 %v2697, %v2739
      %v2768 = vmul.f32 %v2698, %v2740
      %v2769 = vmul.f32 %v2699, %v2739
      %v2770 = vmul.f32 %v2700, %v2740
      %v2771 = vmul.f32 %v2701, %v2739
      %v2772 = vmul.f32 %v2702, %v2740
      %v2773 = vmul.f32 %v2703, %v2739
      %v2774 = vmul.f32 %v2704, %v2740
      %v2775 = vmul.f32 %v2705, %v2739
      %v2776 = vmul.f32 %v2706, %v2740
      %v2777 = vmul.f32 %v2707, %v2739
      %v2778 = vmul.f32 %v2708, %v2740
      %v2779 = vmul.f32 %v2709, %v2739
      %v2780 = vmul.f32 %v2710, %v2740
      %v2781 = vmul.f32 %v2711, %v2739
      %v2782 = vmul.f32 %v2712, %v2740
      %v2783 = vmul.f32 %v2713, %v2739
      %v2784 = vmul.f32 %v2714, %v2740
      %v2785 = vmul.f32 %v2715, %v2739
      %v2786 = vmul.f32 %v2716, %v2740
      %v2787 = vmul.f32 %v2717, %v2739
      %v2788 = vmul.f32 %v2718, %v2740
      %v2789 = vmul.f32 %v2719, %v2739
      %v2790 = vmul.f32 %v2720, %v2740
      %v2791 = vmul.f32 %v2721, %v2739
      %v2792 = vmul.f32 %v2722, %v2740
      %v2793 = vmul.f32 %v2723, %v2739
      %v2794 = vmul.f32 %v2724, %v2740
      %v2795 = vmul.f32 %v2725, %v2739
      %v2796 = vmul.f32 %v2726, %v2740
      %v2797 = vmul.f32 %v2727, %v2739
      %v2798 = vmul.f32 %v2728, %v2740
      %v2799 = vmul.f32 %v2729, %v2739
      %v2800 = vmul.f32 %v2730, %v2740
      %v2801 = vmul.f32 %v2731, %v2739
      %v2802 = vmul.f32 %v2732, %v2740
      %v2803 = vmul.f32 %v2733, %v2739
      %v2804 = vmul.f32 %v2734, %v2740
      %v2805 = vmul.f32 %v2735, %v2739
      %v2806 = vmul.f32 %v2736, %v2740
      %v2807 = vadd.f32 %v2743, %v2744
      %2808 = vadd.xlane.f32.xlu0 %v2807
      %v2809 = vpop.xlane.xlu0 %2808
      %v2810 = vadd.f32 %v2745, %v2746
      %2811 = vadd.xlane.f32.xlu0 %v2810
      %v2812 = vpop.xlane.xlu0 %2811
      %v2813 = vadd.f32 %v2747, %v2748
      %2814 = vadd.xlane.f32.xlu0 %v2813
      %v2815 = vpop.xlane.xlu0 %2814
      %v2816 = vadd.f32 %v2749, %v2750
      %2817 = vadd.xlane.f32.xlu0 %v2816
      %v2818 = vpop.xlane.xlu0 %2817
      %v2819 = vadd.f32 %v2751, %v2752
      %2820 = vadd.xlane.f32.xlu0 %v2819
      %v2821 = vpop.xlane.xlu0 %2820
      %v2822 = vadd.f32 %v2753, %v2754
      %2823 = vadd.xlane.f32.xlu0 %v2822
      %v2824 = vpop.xlane.xlu0 %2823
      %v2825 = vadd.f32 %v2755, %v2756
      %2826 = vadd.xlane.f32.xlu0 %v2825
      %v2827 = vpop.xlane.xlu0 %2826
      %v2828 = vadd.f32 %v2757, %v2758
      %2829 = vadd.xlane.f32.xlu0 %v2828
      %v2830 = vpop.xlane.xlu0 %2829
      %v2831 = vadd.f32 %v2759, %v2760
      %2832 = vadd.xlane.f32.xlu0 %v2831
      %v2833 = vpop.xlane.xlu0 %2832
      %v2834 = vadd.f32 %v2761, %v2762
      %2835 = vadd.xlane.f32.xlu0 %v2834
      %v2836 = vpop.xlane.xlu0 %2835
      %v2837 = vadd.f32 %v2763, %v2764
      %2838 = vadd.xlane.f32.xlu0 %v2837
      %v2839 = vpop.xlane.xlu0 %2838
      %v2840 = vadd.f32 %v2765, %v2766
      %2841 = vadd.xlane.f32.xlu0 %v2840
      %v2842 = vpop.xlane.xlu0 %2841
      %v2843 = vadd.f32 %v2767, %v2768
      %2844 = vadd.xlane.f32.xlu0 %v2843
      %v2845 = vpop.xlane.xlu0 %2844
      %v2846 = vadd.f32 %v2769, %v2770
      %2847 = vadd.xlane.f32.xlu0 %v2846
      %v2848 = vpop.xlane.xlu0 %2847
      %v2849 = vadd.f32 %v2771, %v2772
      %2850 = vadd.xlane.f32.xlu0 %v2849
      %v2851 = vpop.xlane.xlu0 %2850
      %v2852 = vadd.f32 %v2773, %v2774
      %2853 = vadd.xlane.f32.xlu0 %v2852
      %v2854 = vpop.xlane.xlu0 %2853
      %v2855 = vadd.f32 %v2775, %v2776
      %2856 = vadd.xlane.f32.xlu0 %v2855
      %v2857 = vpop.xlane.xlu0 %2856
      %v2858 = vadd.f32 %v2777, %v2778
      %2859 = vadd.xlane.f32.xlu0 %v2858
      %v2860 = vpop.xlane.xlu0 %2859
      %v2861 = vadd.f32 %v2779, %v2780
      %2862 = vadd.xlane.f32.xlu0 %v2861
      %v2863 = vpop.xlane.xlu0 %2862
      %v2864 = vadd.f32 %v2781, %v2782
      %2865 = vadd.xlane.f32.xlu0 %v2864
      %v2866 = vpop.xlane.xlu0 %2865
      %v2867 = vadd.f32 %v2783, %v2784
      %2868 = vadd.xlane.f32.xlu0 %v2867
      %v2869 = vpop.xlane.xlu0 %2868
      %v2870 = vadd.f32 %v2785, %v2786
      %2871 = vadd.xlane.f32.xlu0 %v2870
      %v2872 = vpop.xlane.xlu0 %2871
      %v2873 = vadd.f32 %v2787, %v2788
      %2874 = vadd.xlane.f32.xlu0 %v2873
      %v2875 = vpop.xlane.xlu0 %2874
      %v2876 = vadd.f32 %v2789, %v2790
      %2877 = vadd.xlane.f32.xlu0 %v2876
      %v2878 = vpop.xlane.xlu0 %2877
      %v2879 = vadd.f32 %v2791, %v2792
      %2880 = vadd.xlane.f32.xlu0 %v2879
      %v2881 = vpop.xlane.xlu0 %2880
      %v2882 = vadd.f32 %v2793, %v2794
      %2883 = vadd.xlane.f32.xlu0 %v2882
      %v2884 = vpop.xlane.xlu0 %2883
      %v2885 = vadd.f32 %v2795, %v2796
      %2886 = vadd.xlane.f32.xlu0 %v2885
      %v2887 = vpop.xlane.xlu0 %2886
      %v2888 = vadd.f32 %v2797, %v2798
      %2889 = vadd.xlane.f32.xlu0 %v2888
      %v2890 = vpop.xlane.xlu0 %2889
      %v2891 = vadd.f32 %v2799, %v2800
      %2892 = vadd.xlane.f32.xlu0 %v2891
      %v2893 = vpop.xlane.xlu0 %2892
      %v2894 = vadd.f32 %v2801, %v2802
      %2895 = vadd.xlane.f32.xlu0 %v2894
      %v2896 = vpop.xlane.xlu0 %2895
      %v2897 = vadd.f32 %v2803, %v2804
      %2898 = vadd.xlane.f32.xlu0 %v2897
      %v2899 = vpop.xlane.xlu0 %2898
      %v2900 = vadd.f32 %v2805, %v2806
      %2901 = vadd.xlane.f32.xlu0 %v2900
      %v2902 = vpop.xlane.xlu0 %2901
      %s2903 = sld [smem:[#allocation2]]
      %v2904 = vstv %s2903
      %v2905 = vadd.f32 %v2809, %v2904
      %v2906 = vadd.f32 %v2812, %v2904
      %v2907 = vadd.f32 %v2815, %v2904
      %v2908 = vadd.f32 %v2818, %v2904
      %v2909 = vadd.f32 %v2821, %v2904
      %v2910 = vadd.f32 %v2824, %v2904
      %v2911 = vadd.f32 %v2827, %v2904
      %v2912 = vadd.f32 %v2830, %v2904
      %v2913 = vadd.f32 %v2833, %v2904
      %v2914 = vadd.f32 %v2836, %v2904
      %v2915 = vadd.f32 %v2839, %v2904
      %v2916 = vadd.f32 %v2842, %v2904
      %v2917 = vadd.f32 %v2845, %v2904
      %v2918 = vadd.f32 %v2848, %v2904
      %v2919 = vadd.f32 %v2851, %v2904
      %v2920 = vadd.f32 %v2854, %v2904
      %v2921 = vadd.f32 %v2857, %v2904
      %v2922 = vadd.f32 %v2860, %v2904
      %v2923 = vadd.f32 %v2863, %v2904
      %v2924 = vadd.f32 %v2866, %v2904
      %v2925 = vadd.f32 %v2869, %v2904
      %v2926 = vadd.f32 %v2872, %v2904
      %v2927 = vadd.f32 %v2875, %v2904
      %v2928 = vadd.f32 %v2878, %v2904
      %v2929 = vadd.f32 %v2881, %v2904
      %v2930 = vadd.f32 %v2884, %v2904
      %v2931 = vadd.f32 %v2887, %v2904
      %v2932 = vadd.f32 %v2890, %v2904
      %v2933 = vadd.f32 %v2893, %v2904
      %v2934 = vadd.f32 %v2896, %v2904
      %v2935 = vadd.f32 %v2899, %v2904
      %v2936 = vadd.f32 %v2902, %v2904
      %vm2937 = vcmask 7168
      %2938 = vst.msk [vmem:[%s389] sm:$0xff] %vm2937, %v2905
      %2939 = vst.msk [vmem:[%s389 + $0x8] sm:$0xff] %vm2937, %v2906
      %2940 = vst.msk [vmem:[%s389 + $0x10] sm:$0xff] %vm2937, %v2907
      %2941 = vst.msk [vmem:[%s389 + $0x18] sm:$0xff] %vm2937, %v2908
      %2942 = vst.msk [vmem:[%s389 + $0x20] sm:$0xff] %vm2937, %v2909
      %2943 = vst.msk [vmem:[%s389 + $0x28] sm:$0xff] %vm2937, %v2910
      %2944 = vst.msk [vmem:[%s389 + $0x30] sm:$0xff] %vm2937, %v2911
      %2945 = vst.msk [vmem:[%s389 + $0x38] sm:$0xff] %vm2937, %v2912
      %2946 = vst.msk [vmem:[%s389 + $0x40] sm:$0xff] %vm2937, %v2913
      %2947 = vst.msk [vmem:[%s389 + $0x48] sm:$0xff] %vm2937, %v2914
      %2948 = vst.msk [vmem:[%s389 + $0x50] sm:$0xff] %vm2937, %v2915
      %2949 = vst.msk [vmem:[%s389 + $0x58] sm:$0xff] %vm2937, %v2916
      %2950 = vst.msk [vmem:[%s389 + $0x60] sm:$0xff] %vm2937, %v2917
      %2951 = vst.msk [vmem:[%s389 + $0x68] sm:$0xff] %vm2937, %v2918
      %2952 = vst.msk [vmem:[%s389 + $0x70] sm:$0xff] %vm2937, %v2919
      %2953 = vst.msk [vmem:[%s389 + $0x78] sm:$0xff] %vm2937, %v2920
      %2954 = vst.msk [vmem:[%s389 + $0x80] sm:$0xff] %vm2937, %v2921
      %2955 = vst.msk [vmem:[%s389 + $0x88] sm:$0xff] %vm2937, %v2922
      %2956 = vst.msk [vmem:[%s389 + $0x90] sm:$0xff] %vm2937, %v2923
      %2957 = vst.msk [vmem:[%s389 + $0x98] sm:$0xff] %vm2937, %v2924
      %2958 = vst.msk [vmem:[%s389 + $0xa0] sm:$0xff] %vm2937, %v2925
      %2959 = vst.msk [vmem:[%s389 + $0xa8] sm:$0xff] %vm2937, %v2926
      %2960 = vst.msk [vmem:[%s389 + $0xb0] sm:$0xff] %vm2937, %v2927
      %2961 = vst.msk [vmem:[%s389 + $0xb8] sm:$0xff] %vm2937, %v2928
      %2962 = vst.msk [vmem:[%s389 + $0xc0] sm:$0xff] %vm2937, %v2929
      %2963 = vst.msk [vmem:[%s389 + $0xc8] sm:$0xff] %vm2937, %v2930
      %2964 = vst.msk [vmem:[%s389 + $0xd0] sm:$0xff] %vm2937, %v2931
      %2965 = vst.msk [vmem:[%s389 + $0xd8] sm:$0xff] %vm2937, %v2932
      %2966 = vst.msk [vmem:[%s389 + $0xe0] sm:$0xff] %vm2937, %v2933
      %2967 = vst.msk [vmem:[%s389 + $0xe8] sm:$0xff] %vm2937, %v2934
      %2968 = vst.msk [vmem:[%s389 + $0xf0] sm:$0xff] %vm2937, %v2935
      %2969 = vst.msk [vmem:[%s389 + $0xf8] sm:$0xff] %vm2937, %v2936
      %s2970 = smul.u32 32, %s23
      %p2971 = scmp.lt.s32.totalorder %s2970, 63
      %s2972 = scalar_select %p2971, %s2970, 63
      %s2973 = smul.addr %s2972, 8
      %s2974 = scalar_lea.vmem %s11, %s2973
      // Predicated region
      $region65: #{mlp1_forward.1} parent=63 // pred_check
        %p2975 = pneg %p277
      $region66: #{mlp1_forward.1} parent=63 // pred_check_branch
        %2977 = sbr.rel (%p2975) target = $region68
      $region67: #{mlp1_forward.1} parent=63 // pred_region
        %s2978 = smul.u32 32, %s23
      $region68: #{mlp1_forward.1} parent=63 // pred_fallthru
        _
    $region64: #{mlp1_forward.1} parent=5 // pred_fallthru
      _
    %p2979 = scmp.le.s32.totalorder 2, %s18
    // Predicated region
    $region69: #{mlp1_forward.1} parent=5 // pred_check
      %p2980 = pneg %p2979
    $region70: #{mlp1_forward.1} parent=5 // pred_check_branch
      %2982 = sbr.rel (%p2980) target = $region72
    $region71: #{mlp1_forward.1} parent=5 // pred_region
      %s2983 = ssub.s32 %s18, 2
      // Predicated region
      $region73: #{mlp1_forward.1} parent=71 // pred_check
        %p2984 = pneg %p283
      $region74: #{mlp1_forward.1} parent=71 // pred_check_branch
        %2986 = sbr.rel (%p2984) target = $region76
      $region75: #{mlp1_forward.1} parent=71 // pred_region
        %s2987 = smul.u32 32, %s24
        %p2988 = scmp.lt.s32.totalorder %s2987, 63
        %s2989 = scalar_select %p2988, %s2987, 63
        %s2990 = smul.addr %s2989, 8
        %s2991 = scalar_lea.vmem %s11, %s2990
      $region76: #{mlp1_forward.1} parent=71 // pred_fallthru
        _
    $region72: #{mlp1_forward.1} parent=5 // pred_fallthru
      _
  $region6: #{mlp1_forward.1} parent=0 // loop_footer
    %s22 = sadd.s32 1, %s18
  $region7: #{mlp1_forward.1} parent=0 // loop_footer_branch
    %17 = sbr.rel target = $region3
  $region8: #{mlp1_forward.1} parent=0 // loop_exit
    _

</llo_original>
